<compile_context>
chip_gen: v7x
topology: tpu7x:2x2x1
jax: 0.10.0
libtpu: 0.0.40
codegen_flags: <defaults>
</compile_context>

<pallas_src>
import functools

import jax
import jax.numpy as jnp
from jax.experimental import pallas as pl
from jax.experimental.pallas import tpu as pltpu


# ---------------------------------------------------------------------------
# helpers
# ---------------------------------------------------------------------------
_LANE = 128      # lane width (last dim)
_SUBLANE = 8     # f32 sublane multiple (second-to-last dim)


def _round_up(x, m):
    return ((x + m - 1) // m) * m


def _elu(x):
    # ELU(alpha=1).  Clamp the exp argument so large positives never overflow;
    # the positive branch is taken from `x` directly.
    return jnp.where(x > 0.0, x, jnp.exp(jnp.minimum(x, 0.0)) - 1.0)


def _compiler_params():
    # 48 MiB scoped VMEM: above the 32 MiB default, safely under the 64 MiB
    # physical VMEM of v7x (128 MiB on v5e/v6e).
    return pltpu.CompilerParams(dimension_semantics=("parallel",),
                                vmem_limit_bytes=48 * 1024 * 1024)


def _batch_tile(batch):
    # Tile only the batch axis.  256 rows amortizes the ~0.35us/step pipeline
    # overhead; tiny batches just round up to the f32 sublane multiple.
    return 256 if batch >= 256 else _round_up(max(batch, 1), _SUBLANE)


# ---------------------------------------------------------------------------
# fused MLP chain kernel:  out = ELU(...ELU(ELU(x@W1+b1)@W2+b2)...@Wn+bn)
# ---------------------------------------------------------------------------
def _make_chain_kernel(n_layers):
    """refs = (x_ref, w1, b1, w2, b2, ..., wn, bn, out_ref)."""

    def kernel(*refs):
        x_ref, out_ref = refs[0], refs[-1]
        a = x_ref[...].astype(jnp.float32)
        for layer in range(n_layers):
            w_ref = refs[1 + 2 * layer]
            b_ref = refs[2 + 2 * layer]
            z = jnp.dot(a.astype(jnp.bfloat16), w_ref[...],
                        preferred_element_type=jnp.float32)      # MXU, f32 acc
            a = _elu(z + b_ref[...])                             # f32 VPU/EUP
        out_ref[...] = a.astype(out_ref.dtype)

    return kernel


def fused_mlp_chain(x, weights, biases):
    """Whole Linear+ELU chain in one pallas_call.

    x        : (B, F_in) f32 (unpadded features OK)
    weights  : list of (F_in_pad, F_out_pad) bf16, pre-padded / transposed
    biases   : list of (1, F_out_pad) f32, pre-padded
    returns  : (B, F_out_pad) f32  (caller slices the real feature width)
    """
    batch = x.shape[0]
    f_in_pad = weights[0].shape[0]
    f_out_pad = weights[-1].shape[1]

    tb = _batch_tile(batch)
    b_pad = _round_up(batch, tb)
    x = jnp.pad(x.astype(jnp.float32),
                ((0, b_pad - batch), (0, f_in_pad - x.shape[1])))

    in_specs = [pl.BlockSpec((tb, f_in_pad), lambda i: (i, 0))]
    args = [x]
    for w, b in zip(weights, biases):
        in_specs.append(pl.BlockSpec(w.shape, lambda i: (0, 0)))   # weight stays resident
        in_specs.append(pl.BlockSpec(b.shape, lambda i: (0, 0)))   # bias stays resident
        args += [w, b]

    out = pl.pallas_call(
        _make_chain_kernel(len(weights)),
        out_shape=jax.ShapeDtypeStruct((b_pad, f_out_pad), jnp.float32),
        grid=(b_pad // tb,),
        in_specs=in_specs,
        out_specs=pl.BlockSpec((tb, f_out_pad), lambda i: (i, 0)),
        compiler_params=_compiler_params(),
    )(*args)
    return out[:batch]


# ---------------------------------------------------------------------------
# fused __get_pred kernel: ELU(user_emb)->translation  +  query_embed->translation
# ---------------------------------------------------------------------------
def _pred_kernel(uemb_ref, q_ref, wq_ref, bq_ref, wt_ref, bt_ref, out_ref):
    # user branch: ELU(embedding row) -> translation (Linear + ELU)
    u = _elu(uemb_ref[...].astype(jnp.float32))
    ut = _elu(jnp.dot(u.astype(jnp.bfloat16), wt_ref[...],
                      preferred_element_type=jnp.float32) + bt_ref[...])
    # query branch: query_embed (Linear + ELU) -> translation (Linear + ELU)
    q1 = _elu(jnp.dot(q_ref[...].astype(jnp.bfloat16), wq_ref[...],
                      preferred_element_type=jnp.float32) + bq_ref[...])
    qt = _elu(jnp.dot(q1.astype(jnp.bfloat16), wt_ref[...],
                      preferred_element_type=jnp.float32) + bt_ref[...])
    out_ref[...] = (ut + qt).astype(out_ref.dtype)


def fused_pred(u_emb, query, wq, bq, wt, bt):
    batch = u_emb.shape[0]
    e_pad = wt.shape[0]
    t_pad = wq.shape[0]

    tb = _batch_tile(batch)
    b_pad = _round_up(batch, tb)
    u_emb = jnp.pad(u_emb.astype(jnp.float32),
                    ((0, b_pad - batch), (0, e_pad - u_emb.shape[1])))
    query = jnp.pad(query.astype(jnp.float32),
                    ((0, b_pad - batch), (0, t_pad - query.shape[1])))

    out = pl.pallas_call(
        _pred_kernel,
        out_shape=jax.ShapeDtypeStruct((b_pad, e_pad), jnp.float32),
        grid=(b_pad // tb,),
        in_specs=[
            pl.BlockSpec((tb, e_pad), lambda i: (i, 0)),
            pl.BlockSpec((tb, t_pad), lambda i: (i, 0)),
            pl.BlockSpec(wq.shape, lambda i: (0, 0)),
            pl.BlockSpec(bq.shape, lambda i: (0, 0)),
            pl.BlockSpec(wt.shape, lambda i: (0, 0)),
            pl.BlockSpec(bt.shape, lambda i: (0, 0)),
        ],
        out_specs=pl.BlockSpec((tb, e_pad), lambda i: (i, 0)),
        compiler_params=_compiler_params(),
    )(u_emb, query, wq, bq, wt, bt)
    return out[:batch]


# ---------------------------------------------------------------------------
# parameters (transposed-vs-torch layout, padded once at setup)
# ---------------------------------------------------------------------------
def init_params(key, text_size, embed_size, user_size):
    """Raw (unpadded) params; Linear weights stored as (in_features, out_features)."""
    def xavier(k, fan_in, fan_out):
        lim = (6.0 / (fan_in + fan_out)) ** 0.5
        return jax.random.uniform(k, (fan_in, fan_out), jnp.float32, -lim, lim)

    def bias(k, n):
        # torch init zero-fills biases; use small random ones so the numeric
        # check below is more discriminative (forward semantics are identical).
        return 0.05 * jax.random.normal(k, (n,), jnp.float32)

    ks = jax.random.split(key, 13)
    e, t = embed_size, text_size
    return {
        "user_embed": jax.random.normal(ks[0], (user_size, e), jnp.float32),
        "tf1_w": xavier(ks[1], t, e), "tf1_b": bias(ks[2], e),      # textual_fc[0]
        "tf2_w": xavier(ks[3], e, e), "tf2_b": bias(ks[4], e),      # textual_fc[3]
        "query_w": xavier(ks[5], t, e), "query_b": bias(ks[6], e),  # query_embed
        "trans_w": xavier(ks[7], e, e), "trans_b": bias(ks[8], e),  # translation
        "if1_w": xavier(ks[9], e, e), "if1_b": bias(ks[10], e),     # item_fc[0]
        "if2_w": xavier(ks[11], e, e), "if2_b": bias(ks[12], e),    # item_fc[2]
    }


def prepare_params(raw, text_size, embed_size):
    """Pad every parameter to lane-dense (multiple-of-128) feature dims once,
    cast MXU weights to bf16, keep biases / embedding table f32."""
    e_pad = _round_up(embed_size, _LANE)

    def pad_w(w):
        out = jnp.zeros((_round_up(w.shape[0], _LANE),
                         _round_up(w.shape[1], _LANE)), jnp.float32)
        out = out.at[: w.shape[0], : w.shape[1]].set(w)
        return out.astype(jnp.bfloat16)

    def pad_b(b):
        return jnp.pad(b, (0, _round_up(b.shape[0], _LANE) - b.shape[0])
                       ).reshape(1, -1).astype(jnp.float32)

    pp = {"embed_size": embed_size}
    pp["user_embed"] = jnp.pad(raw["user_embed"],
                               ((0, 0), (0, e_pad - embed_size))).astype(jnp.float32)
    for name in ("tf1", "tf2", "query", "trans", "if1", "if2"):
        pp[name + "_w"] = pad_w(raw[name + "_w"])
        pp[name + "_b"] = pad_b(raw[name + "_b"])
    return pp


# ---------------------------------------------------------------------------
# full forward (mode='text', is_training=True, dropout=0.0)
# ---------------------------------------------------------------------------
def model_forward(pp, user, query, pos_text, neg_text):
    """Returns (item_predict, pos_item, neg_items), matching Model.forward."""
    e = pp["embed_size"]

    # ---- __get_pred ----------------------------------------------------
    # TODO(synk): fold this row gather into `_pred_kernel` via
    # PrefetchScalarGridSpec + per-row DMA from an HBM-resident table instead
    # of a wrapper-side jnp.take (only worthwhile for very large user tables).
    u_emb = jnp.take(pp["user_embed"], user, axis=0)
    item_predict = fused_pred(u_emb, query,
                              pp["query_w"], pp["query_b"],
                              pp["trans_w"], pp["trans_b"])[:, :e]

    # ---- __get_item: textual_fc -> item_fc -> translation (5 fused layers)
    # Dropout(p=0.0) between the textual_fc layers is the identity: omitted.
    weights = [pp["tf1_w"], pp["tf2_w"], pp["if1_w"], pp["if2_w"], pp["trans_w"]]
    biases = [pp["tf1_b"], pp["tf2_b"], pp["if1_b"], pp["if2_b"], pp["trans_b"]]

    pos2d = pos_text.reshape(-1, pos_text.shape[-1])
    neg2d = neg_text.reshape(-1, neg_text.shape[-1])
    # one kernel call for pos + neg: weights DMA'd once, shared across both.
    items = fused_mlp_chain(jnp.concatenate([pos2d, neg2d], axis=0), weights, biases)

    n_pos = pos2d.shape[0]
    pos_item = items[:n_pos, :e].reshape(*pos_text.shape[:-1], e)
    neg_items = items[n_pos:, :e].reshape(*neg_text.shape[:-1], e)
    return item_predict, pos_item, neg_items


# ---------------------------------------------------------------------------
# pure-JAX reference (same bf16-operand / f32-accumulate numerics)
# ---------------------------------------------------------------------------
def _ref_linear_elu(x, w, b):
    z = jnp.dot(x.astype(jnp.bfloat16), w.astype(jnp.bfloat16),
                preferred_element_type=jnp.float32) + b
    return _elu(z)


def reference_forward(raw, user, query, pos_text, neg_text):
    u = _elu(jnp.take(raw["user_embed"], user, axis=0))
    u = _ref_linear_elu(u, raw["trans_w"], raw["trans_b"])
    q = _ref_linear_elu(query, raw["query_w"], raw["query_b"])
    q = _ref_linear_elu(q, raw["trans_w"], raw["trans_b"])
    item_predict = u + q

    def get_item(text):
        lead = text.shape[:-1]
        h = text.reshape(-1, text.shape[-1])
        for name in ("tf1", "tf2", "if1", "if2", "trans"):
            h = _ref_linear_elu(h, raw[name + "_w"], raw[name + "_b"])
        return h.reshape(*lead, h.shape[-1])

    return item_predict, get_item(pos_text), get_item(neg_text)


# ---------------------------------------------------------------------------
# demo / smoke test
# ---------------------------------------------------------------------------
if __name__ == "__main__":
    TEXT_SIZE, EMBED_SIZE, USER_SIZE = 24, 32, 17
    BATCH, N_NEG = 5, 3

    key = jax.random.PRNGKey(0)
    k_u, k_q, k_p, k_n, k_w = jax.random.split(key, 5)
    user = jax.random.randint(k_u, (BATCH,), 0, USER_SIZE, dtype=jnp.int32)
    query = jax.random.normal(k_q, (BATCH, TEXT_SIZE), jnp.float32)
    pos_text = jax.random.normal(k_p, (BATCH, TEXT_SIZE), jnp.float32)
    neg_text = jax.random.normal(k_n, (BATCH, N_NEG, TEXT_SIZE), jnp.float32)

    raw = init_params(k_w, TEXT_SIZE, EMBED_SIZE, USER_SIZE)
    padded = prepare_params(raw, TEXT_SIZE, EMBED_SIZE)

    fwd = jax.jit(functools.partial(model_forward, padded))
    item_predict, pos_item, neg_items = fwd(user, query, pos_text, neg_text)
    jax.block_until_ready((item_predict, pos_item, neg_items))

    ref_pred, ref_pos, ref_neg = reference_forward(raw, user, query, pos_text, neg_text)
    for got, ref in ((item_predict, ref_pred), (pos_item, ref_pos), (neg_items, ref_neg)):
        assert got.shape == ref.shape, (got.shape, ref.shape)
        err = float(jnp.max(jnp.abs(got - ref)))
        assert err < 2e-3, f"max abs error too large: {err}"

    print("KERNEL_OK")
</pallas_src>

<mosaic_0001>
module attributes {stable_mosaic.version = 11 : i64} {
  func.func @_pred_kernel(%arg0: i32, %arg1: memref<8x128xf32, #tpu.memory_space<vmem>>, %arg2: memref<8x128xf32, #tpu.memory_space<vmem>>, %arg3: memref<128x128xbf16, #tpu.memory_space<vmem>>, %arg4: memref<1x128xf32, #tpu.memory_space<vmem>>, %arg5: memref<128x128xbf16, #tpu.memory_space<vmem>>, %arg6: memref<1x128xf32, #tpu.memory_space<vmem>>, %arg7: memref<8x128xf32, #tpu.memory_space<vmem>>) attributes {dimension_semantics = [#tpu.dimension_semantics<parallel>], iteration_bounds = array<i64: 1>, scalar_prefetch = 0 : i64, scratch_operands = 0 : i64, tpu.core_type = #tpu.core_type<tc>, window_params = [{transform_indices = @transform_0, window_bounds = array<i64: 8, 128>}, {transform_indices = @transform_1, window_bounds = array<i64: 8, 128>}, {pipeline_mode = #tpu.pipeline_mode<synchronous>, transform_indices = @transform_2, window_bounds = array<i64: 128, 128>}, {pipeline_mode = #tpu.pipeline_mode<synchronous>, transform_indices = @transform_3, window_bounds = array<i64: 1, 128>}, {pipeline_mode = #tpu.pipeline_mode<synchronous>, transform_indices = @transform_4, window_bounds = array<i64: 128, 128>}, {pipeline_mode = #tpu.pipeline_mode<synchronous>, transform_indices = @transform_5, window_bounds = array<i64: 1, 128>}, {transform_indices = @transform_6, window_bounds = array<i64: 8, 128>}]} {
    %c0 = arith.constant 0 : index
    %c0_0 = arith.constant 0 : index
    %0 = vector.load %arg1[%c0, %c0_0] : memref<8x128xf32, #tpu.memory_space<vmem>>, vector<8x128xf32>
    %cst = arith.constant 0.000000e+00 : f32
    %1 = vector.broadcast %cst : f32 to vector<8x128xf32>
    %2 = arith.cmpf ogt, %0, %1 : vector<8x128xf32>
    %cst_1 = arith.constant 0.000000e+00 : f32
    %3 = vector.broadcast %cst_1 : f32 to vector<8x128xf32>
    %4 = arith.minimumf %0, %3 : vector<8x128xf32>
    %5 = math.exp %4 : vector<8x128xf32>
    %cst_2 = arith.constant 1.000000e+00 : f32
    %6 = vector.broadcast %cst_2 : f32 to vector<8x128xf32>
    %7 = arith.subf %5, %6 : vector<8x128xf32>
    %8 = arith.select %2, %0, %7 : vector<8x128xi1>, vector<8x128xf32>
    %9 = arith.truncf %8 : vector<8x128xf32> to vector<8x128xbf16>
    %c0_3 = arith.constant 0 : index
    %c0_4 = arith.constant 0 : index
    %10 = vector.load %arg5[%c0_3, %c0_4] : memref<128x128xbf16, #tpu.memory_space<vmem>>, vector<128x128xbf16>
    %cst_5 = arith.constant dense<0.000000e+00> : vector<8x128xf32>
    %11 = tpu.matmul %9, %10, %cst_5 {dimension_numbers = #tpu.dot_dimension_numbers<[1], [0], [0], [1], [0, 0, 1, 1], [], []>} : vector<8x128xbf16>, vector<128x128xbf16>, vector<8x128xf32> -> vector<8x128xf32>
    %c0_6 = arith.constant 0 : index
    %c0_7 = arith.constant 0 : index
    %12 = vector.load %arg6[%c0_6, %c0_7] : memref<1x128xf32, #tpu.memory_space<vmem>>, vector<1x128xf32>
    %13 = vector.broadcast %12 : vector<1x128xf32> to vector<8x128xf32>
    %14 = arith.addf %11, %13 : vector<8x128xf32>
    %cst_8 = arith.constant 0.000000e+00 : f32
    %15 = vector.broadcast %cst_8 : f32 to vector<8x128xf32>
    %16 = arith.cmpf ogt, %14, %15 : vector<8x128xf32>
    %cst_9 = arith.constant 0.000000e+00 : f32
    %17 = vector.broadcast %cst_9 : f32 to vector<8x128xf32>
    %18 = arith.minimumf %14, %17 : vector<8x128xf32>
    %19 = math.exp %18 : vector<8x128xf32>
    %cst_10 = arith.constant 1.000000e+00 : f32
    %20 = vector.broadcast %cst_10 : f32 to vector<8x128xf32>
    %21 = arith.subf %19, %20 : vector<8x128xf32>
    %22 = arith.select %16, %14, %21 : vector<8x128xi1>, vector<8x128xf32>
    %c0_11 = arith.constant 0 : index
    %c0_12 = arith.constant 0 : index
    %23 = vector.load %arg2[%c0_11, %c0_12] : memref<8x128xf32, #tpu.memory_space<vmem>>, vector<8x128xf32>
    %24 = arith.truncf %23 : vector<8x128xf32> to vector<8x128xbf16>
    %c0_13 = arith.constant 0 : index
    %c0_14 = arith.constant 0 : index
    %25 = vector.load %arg3[%c0_13, %c0_14] : memref<128x128xbf16, #tpu.memory_space<vmem>>, vector<128x128xbf16>
    %cst_15 = arith.constant dense<0.000000e+00> : vector<8x128xf32>
    %26 = tpu.matmul %24, %25, %cst_15 {dimension_numbers = #tpu.dot_dimension_numbers<[1], [0], [0], [1], [0, 0, 1, 1], [], []>} : vector<8x128xbf16>, vector<128x128xbf16>, vector<8x128xf32> -> vector<8x128xf32>
    %c0_16 = arith.constant 0 : index
    %c0_17 = arith.constant 0 : index
    %27 = vector.load %arg4[%c0_16, %c0_17] : memref<1x128xf32, #tpu.memory_space<vmem>>, vector<1x128xf32>
    %28 = vector.broadcast %27 : vector<1x128xf32> to vector<8x128xf32>
    %29 = arith.addf %26, %28 : vector<8x128xf32>
    %cst_18 = arith.constant 0.000000e+00 : f32
    %30 = vector.broadcast %cst_18 : f32 to vector<8x128xf32>
    %31 = arith.cmpf ogt, %29, %30 : vector<8x128xf32>
    %cst_19 = arith.constant 0.000000e+00 : f32
    %32 = vector.broadcast %cst_19 : f32 to vector<8x128xf32>
    %33 = arith.minimumf %29, %32 : vector<8x128xf32>
    %34 = math.exp %33 : vector<8x128xf32>
    %cst_20 = arith.constant 1.000000e+00 : f32
    %35 = vector.broadcast %cst_20 : f32 to vector<8x128xf32>
    %36 = arith.subf %34, %35 : vector<8x128xf32>
    %37 = arith.select %31, %29, %36 : vector<8x128xi1>, vector<8x128xf32>
    %38 = arith.truncf %37 : vector<8x128xf32> to vector<8x128xbf16>
    %c0_21 = arith.constant 0 : index
    %c0_22 = arith.constant 0 : index
    %39 = vector.load %arg5[%c0_21, %c0_22] : memref<128x128xbf16, #tpu.memory_space<vmem>>, vector<128x128xbf16>
    %cst_23 = arith.constant dense<0.000000e+00> : vector<8x128xf32>
    %40 = tpu.matmul %38, %39, %cst_23 {dimension_numbers = #tpu.dot_dimension_numbers<[1], [0], [0], [1], [0, 0, 1, 1], [], []>} : vector<8x128xbf16>, vector<128x128xbf16>, vector<8x128xf32> -> vector<8x128xf32>
    %c0_24 = arith.constant 0 : index
    %c0_25 = arith.constant 0 : index
    %41 = vector.load %arg6[%c0_24, %c0_25] : memref<1x128xf32, #tpu.memory_space<vmem>>, vector<1x128xf32>
    %42 = vector.broadcast %41 : vector<1x128xf32> to vector<8x128xf32>
    %43 = arith.addf %40, %42 : vector<8x128xf32>
    %cst_26 = arith.constant 0.000000e+00 : f32
    %44 = vector.broadcast %cst_26 : f32 to vector<8x128xf32>
    %45 = arith.cmpf ogt, %43, %44 : vector<8x128xf32>
    %cst_27 = arith.constant 0.000000e+00 : f32
    %46 = vector.broadcast %cst_27 : f32 to vector<8x128xf32>
    %47 = arith.minimumf %43, %46 : vector<8x128xf32>
    %48 = math.exp %47 : vector<8x128xf32>
    %cst_28 = arith.constant 1.000000e+00 : f32
    %49 = vector.broadcast %cst_28 : f32 to vector<8x128xf32>
    %50 = arith.subf %48, %49 : vector<8x128xf32>
    %51 = arith.select %45, %43, %50 : vector<8x128xi1>, vector<8x128xf32>
    %52 = arith.addf %22, %51 : vector<8x128xf32>
    %c0_29 = arith.constant 0 : index
    %c0_30 = arith.constant 0 : index
    %53 = vector.load %arg7[%c0_29, %c0_30] : memref<8x128xf32, #tpu.memory_space<vmem>>, vector<8x128xf32>
    tpu.vector_store %arg7[%c0_29, %c0_30], %52 {strides = array<i32>} : memref<8x128xf32, #tpu.memory_space<vmem>>, vector<8x128xf32>,
    return
  }
  func.func @transform_0(%arg0: i32) -> (i32, i32) {
    %c0_i32 = arith.constant 0 : i32
    %c0_i32_0 = arith.constant 0 : i32
    return %arg0, %c0_i32 : i32, i32
  }
  func.func @transform_1(%arg0: i32) -> (i32, i32) {
    %c0_i32 = arith.constant 0 : i32
    %c0_i32_0 = arith.constant 0 : i32
    return %arg0, %c0_i32 : i32, i32
  }
  func.func @transform_2(%arg0: i32) -> (i32, i32) {
    %c0_i32 = arith.constant 0 : i32
    %c0_i32_0 = arith.constant 0 : i32
    %c0_i32_1 = arith.constant 0 : i32
    return %c0_i32, %c0_i32_0 : i32, i32
  }
  func.func @transform_3(%arg0: i32) -> (i32, i32) {
    %c0_i32 = arith.constant 0 : i32
    %c0_i32_0 = arith.constant 0 : i32
    %c0_i32_1 = arith.constant 0 : i32
    return %c0_i32, %c0_i32_0 : i32, i32
  }
  func.func @transform_4(%arg0: i32) -> (i32, i32) {
    %c0_i32 = arith.constant 0 : i32
    %c0_i32_0 = arith.constant 0 : i32
    %c0_i32_1 = arith.constant 0 : i32
    return %c0_i32, %c0_i32_0 : i32, i32
  }
  func.func @transform_5(%arg0: i32) -> (i32, i32) {
    %c0_i32 = arith.constant 0 : i32
    %c0_i32_0 = arith.constant 0 : i32
    %c0_i32_1 = arith.constant 0 : i32
    return %c0_i32, %c0_i32_0 : i32, i32
  }
  func.func @transform_6(%arg0: i32) -> (i32, i32) {
    %c0_i32 = arith.constant 0 : i32
    %c0_i32_0 = arith.constant 0 : i32
    return %arg0, %c0_i32 : i32, i32
  }
}

module attributes {stable_mosaic.version = 11 : i64} {
  func.func @kernel(%arg0: i32, %arg1: memref<24x128xf32, #tpu.memory_space<vmem>>, %arg2: memref<128x128xbf16, #tpu.memory_space<vmem>>, %arg3: memref<1x128xf32, #tpu.memory_space<vmem>>, %arg4: memref<128x128xbf16, #tpu.memory_space<vmem>>, %arg5: memref<1x128xf32, #tpu.memory_space<vmem>>, %arg6: memref<128x128xbf16, #tpu.memory_space<vmem>>, %arg7: memref<1x128xf32, #tpu.memory_space<vmem>>, %arg8: memref<128x128xbf16, #tpu.memory_space<vmem>>, %arg9: memref<1x128xf32, #tpu.memory_space<vmem>>, %arg10: memref<128x128xbf16, #tpu.memory_space<vmem>>, %arg11: memref<1x128xf32, #tpu.memory_space<vmem>>, %arg12: memref<24x128xf32, #tpu.memory_space<vmem>>) attributes {dimension_semantics = [#tpu.dimension_semantics<parallel>], iteration_bounds = array<i64: 1>, scalar_prefetch = 0 : i64, scratch_operands = 0 : i64, tpu.core_type = #tpu.core_type<tc>, window_params = [{transform_indices = @transform_0, window_bounds = array<i64: 24, 128>}, {pipeline_mode = #tpu.pipeline_mode<synchronous>, transform_indices = @transform_1, window_bounds = array<i64: 128, 128>}, {pipeline_mode = #tpu.pipeline_mode<synchronous>, transform_indices = @transform_2, window_bounds = array<i64: 1, 128>}, {pipeline_mode = #tpu.pipeline_mode<synchronous>, transform_indices = @transform_3, window_bounds = array<i64: 128, 128>}, {pipeline_mode = #tpu.pipeline_mode<synchronous>, transform_indices = @transform_4, window_bounds = array<i64: 1, 128>}, {pipeline_mode = #tpu.pipeline_mode<synchronous>, transform_indices = @transform_5, window_bounds = array<i64: 128, 128>}, {pipeline_mode = #tpu.pipeline_mode<synchronous>, transform_indices = @transform_6, window_bounds = array<i64: 1, 128>}, {pipeline_mode = #tpu.pipeline_mode<synchronous>, transform_indices = @transform_7, window_bounds = array<i64: 128, 128>}, {pipeline_mode = #tpu.pipeline_mode<synchronous>, transform_indices = @transform_8, window_bounds = array<i64: 1, 128>}, {pipeline_mode = #tpu.pipeline_mode<synchronous>, transform_indices = @transform_9, window_bounds = array<i64: 128, 128>}, {pipeline_mode = #tpu.pipeline_mode<synchronous>, transform_indices = @transform_10, window_bounds = array<i64: 1, 128>}, {transform_indices = @transform_11, window_bounds = array<i64: 24, 128>}]} {
    %c0 = arith.constant 0 : index
    %c0_0 = arith.constant 0 : index
    %0 = vector.load %arg1[%c0, %c0_0] : memref<24x128xf32, #tpu.memory_space<vmem>>, vector<24x128xf32>
    %1 = arith.truncf %0 : vector<24x128xf32> to vector<24x128xbf16>
    %c0_1 = arith.constant 0 : index
    %c0_2 = arith.constant 0 : index
    %2 = vector.load %arg2[%c0_1, %c0_2] : memref<128x128xbf16, #tpu.memory_space<vmem>>, vector<128x128xbf16>
    %cst = arith.constant dense<0.000000e+00> : vector<24x128xf32>
    %3 = tpu.matmul %1, %2, %cst {dimension_numbers = #tpu.dot_dimension_numbers<[1], [0], [0], [1], [0, 0, 1, 1], [], []>} : vector<24x128xbf16>, vector<128x128xbf16>, vector<24x128xf32> -> vector<24x128xf32>
    %c0_3 = arith.constant 0 : index
    %c0_4 = arith.constant 0 : index
    %4 = vector.load %arg3[%c0_3, %c0_4] : memref<1x128xf32, #tpu.memory_space<vmem>>, vector<1x128xf32>
    %5 = vector.broadcast %4 : vector<1x128xf32> to vector<24x128xf32>
    %6 = arith.addf %3, %5 : vector<24x128xf32>
    %cst_5 = arith.constant 0.000000e+00 : f32
    %7 = vector.broadcast %cst_5 : f32 to vector<24x128xf32>
    %8 = arith.cmpf ogt, %6, %7 : vector<24x128xf32>
    %cst_6 = arith.constant 0.000000e+00 : f32
    %9 = vector.broadcast %cst_6 : f32 to vector<24x128xf32>
    %10 = arith.minimumf %6, %9 : vector<24x128xf32>
    %11 = math.exp %10 : vector<24x128xf32>
    %cst_7 = arith.constant 1.000000e+00 : f32
    %12 = vector.broadcast %cst_7 : f32 to vector<24x128xf32>
    %13 = arith.subf %11, %12 : vector<24x128xf32>
    %14 = arith.select %8, %6, %13 : vector<24x128xi1>, vector<24x128xf32>
    %15 = arith.truncf %14 : vector<24x128xf32> to vector<24x128xbf16>
    %c0_8 = arith.constant 0 : index
    %c0_9 = arith.constant 0 : index
    %16 = vector.load %arg4[%c0_8, %c0_9] : memref<128x128xbf16, #tpu.memory_space<vmem>>, vector<128x128xbf16>
    %cst_10 = arith.constant dense<0.000000e+00> : vector<24x128xf32>
    %17 = tpu.matmul %15, %16, %cst_10 {dimension_numbers = #tpu.dot_dimension_numbers<[1], [0], [0], [1], [0, 0, 1, 1], [], []>} : vector<24x128xbf16>, vector<128x128xbf16>, vector<24x128xf32> -> vector<24x128xf32>
    %c0_11 = arith.constant 0 : index
    %c0_12 = arith.constant 0 : index
    %18 = vector.load %arg5[%c0_11, %c0_12] : memref<1x128xf32, #tpu.memory_space<vmem>>, vector<1x128xf32>
    %19 = vector.broadcast %18 : vector<1x128xf32> to vector<24x128xf32>
    %20 = arith.addf %17, %19 : vector<24x128xf32>
    %cst_13 = arith.constant 0.000000e+00 : f32
    %21 = vector.broadcast %cst_13 : f32 to vector<24x128xf32>
    %22 = arith.cmpf ogt, %20, %21 : vector<24x128xf32>
    %cst_14 = arith.constant 0.000000e+00 : f32
    %23 = vector.broadcast %cst_14 : f32 to vector<24x128xf32>
    %24 = arith.minimumf %20, %23 : vector<24x128xf32>
    %25 = math.exp %24 : vector<24x128xf32>
    %cst_15 = arith.constant 1.000000e+00 : f32
    %26 = vector.broadcast %cst_15 : f32 to vector<24x128xf32>
    %27 = arith.subf %25, %26 : vector<24x128xf32>
    %28 = arith.select %22, %20, %27 : vector<24x128xi1>, vector<24x128xf32>
    %29 = arith.truncf %28 : vector<24x128xf32> to vector<24x128xbf16>
    %c0_16 = arith.constant 0 : index
    %c0_17 = arith.constant 0 : index
    %30 = vector.load %arg6[%c0_16, %c0_17] : memref<128x128xbf16, #tpu.memory_space<vmem>>, vector<128x128xbf16>
    %cst_18 = arith.constant dense<0.000000e+00> : vector<24x128xf32>
    %31 = tpu.matmul %29, %30, %cst_18 {dimension_numbers = #tpu.dot_dimension_numbers<[1], [0], [0], [1], [0, 0, 1, 1], [], []>} : vector<24x128xbf16>, vector<128x128xbf16>, vector<24x128xf32> -> vector<24x128xf32>
    %c0_19 = arith.constant 0 : index
    %c0_20 = arith.constant 0 : index
    %32 = vector.load %arg7[%c0_19, %c0_20] : memref<1x128xf32, #tpu.memory_space<vmem>>, vector<1x128xf32>
    %33 = vector.broadcast %32 : vector<1x128xf32> to vector<24x128xf32>
    %34 = arith.addf %31, %33 : vector<24x128xf32>
    %cst_21 = arith.constant 0.000000e+00 : f32
    %35 = vector.broadcast %cst_21 : f32 to vector<24x128xf32>
    %36 = arith.cmpf ogt, %34, %35 : vector<24x128xf32>
    %cst_22 = arith.constant 0.000000e+00 : f32
    %37 = vector.broadcast %cst_22 : f32 to vector<24x128xf32>
    %38 = arith.minimumf %34, %37 : vector<24x128xf32>
    %39 = math.exp %38 : vector<24x128xf32>
    %cst_23 = arith.constant 1.000000e+00 : f32
    %40 = vector.broadcast %cst_23 : f32 to vector<24x128xf32>
    %41 = arith.subf %39, %40 : vector<24x128xf32>
    %42 = arith.select %36, %34, %41 : vector<24x128xi1>, vector<24x128xf32>
    %43 = arith.truncf %42 : vector<24x128xf32> to vector<24x128xbf16>
    %c0_24 = arith.constant 0 : index
    %c0_25 = arith.constant 0 : index
    %44 = vector.load %arg8[%c0_24, %c0_25] : memref<128x128xbf16, #tpu.memory_space<vmem>>, vector<128x128xbf16>
    %cst_26 = arith.constant dense<0.000000e+00> : vector<24x128xf32>
    %45 = tpu.matmul %43, %44, %cst_26 {dimension_numbers = #tpu.dot_dimension_numbers<[1], [0], [0], [1], [0, 0, 1, 1], [], []>} : vector<24x128xbf16>, vector<128x128xbf16>, vector<24x128xf32> -> vector<24x128xf32>
    %c0_27 = arith.constant 0 : index
    %c0_28 = arith.constant 0 : index
    %46 = vector.load %arg9[%c0_27, %c0_28] : memref<1x128xf32, #tpu.memory_space<vmem>>, vector<1x128xf32>
    %47 = vector.broadcast %46 : vector<1x128xf32> to vector<24x128xf32>
    %48 = arith.addf %45, %47 : vector<24x128xf32>
    %cst_29 = arith.constant 0.000000e+00 : f32
    %49 = vector.broadcast %cst_29 : f32 to vector<24x128xf32>
    %50 = arith.cmpf ogt, %48, %49 : vector<24x128xf32>
    %cst_30 = arith.constant 0.000000e+00 : f32
    %51 = vector.broadcast %cst_30 : f32 to vector<24x128xf32>
    %52 = arith.minimumf %48, %51 : vector<24x128xf32>
    %53 = math.exp %52 : vector<24x128xf32>
    %cst_31 = arith.constant 1.000000e+00 : f32
    %54 = vector.broadcast %cst_31 : f32 to vector<24x128xf32>
    %55 = arith.subf %53, %54 : vector<24x128xf32>
    %56 = arith.select %50, %48, %55 : vector<24x128xi1>, vector<24x128xf32>
    %57 = arith.truncf %56 : vector<24x128xf32> to vector<24x128xbf16>
    %c0_32 = arith.constant 0 : index
    %c0_33 = arith.constant 0 : index
    %58 = vector.load %arg10[%c0_32, %c0_33] : memref<128x128xbf16, #tpu.memory_space<vmem>>, vector<128x128xbf16>
    %cst_34 = arith.constant dense<0.000000e+00> : vector<24x128xf32>
    %59 = tpu.matmul %57, %58, %cst_34 {dimension_numbers = #tpu.dot_dimension_numbers<[1], [0], [0], [1], [0, 0, 1, 1], [], []>} : vector<24x128xbf16>, vector<128x128xbf16>, vector<24x128xf32> -> vector<24x128xf32>
    %c0_35 = arith.constant 0 : index
    %c0_36 = arith.constant 0 : index
    %60 = vector.load %arg11[%c0_35, %c0_36] : memref<1x128xf32, #tpu.memory_space<vmem>>, vector<1x128xf32>
    %61 = vector.broadcast %60 : vector<1x128xf32> to vector<24x128xf32>
    %62 = arith.addf %59, %61 : vector<24x128xf32>
    %cst_37 = arith.constant 0.000000e+00 : f32
    %63 = vector.broadcast %cst_37 : f32 to vector<24x128xf32>
    %64 = arith.cmpf ogt, %62, %63 : vector<24x128xf32>
    %cst_38 = arith.constant 0.000000e+00 : f32
    %65 = vector.broadcast %cst_38 : f32 to vector<24x128xf32>
    %66 = arith.minimumf %62, %65 : vector<24x128xf32>
    %67 = math.exp %66 : vector<24x128xf32>
    %cst_39 = arith.constant 1.000000e+00 : f32
    %68 = vector.broadcast %cst_39 : f32 to vector<24x128xf32>
    %69 = arith.subf %67, %68 : vector<24x128xf32>
    %70 = arith.select %64, %62, %69 : vector<24x128xi1>, vector<24x128xf32>
    %c0_40 = arith.constant 0 : index
    %c0_41 = arith.constant 0 : index
    %71 = vector.load %arg12[%c0_40, %c0_41] : memref<24x128xf32, #tpu.memory_space<vmem>>, vector<24x128xf32>
    tpu.vector_store %arg12[%c0_40, %c0_41], %70 {strides = array<i32>} : memref<24x128xf32, #tpu.memory_space<vmem>>, vector<24x128xf32>,
    return
  }
  func.func @transform_0(%arg0: i32) -> (i32, i32) {
    %c0_i32 = arith.constant 0 : i32
    %c0_i32_0 = arith.constant 0 : i32
    return %arg0, %c0_i32 : i32, i32
  }
  func.func @transform_1(%arg0: i32) -> (i32, i32) {
    %c0_i32 = arith.constant 0 : i32
    %c0_i32_0 = arith.constant 0 : i32
    %c0_i32_1 = arith.constant 0 : i32
    return %c0_i32, %c0_i32_0 : i32, i32
  }
  func.func @transform_2(%arg0: i32) -> (i32, i32) {
    %c0_i32 = arith.constant 0 : i32
    %c0_i32_0 = arith.constant 0 : i32
    %c0_i32_1 = arith.constant 0 : i32
    return %c0_i32, %c0_i32_0 : i32, i32
  }
  func.func @transform_3(%arg0: i32) -> (i32, i32) {
    %c0_i32 = arith.constant 0 : i32
    %c0_i32_0 = arith.constant 0 : i32
    %c0_i32_1 = arith.constant 0 : i32
    return %c0_i32, %c0_i32_0 : i32, i32
  }
  func.func @transform_4(%arg0: i32) -> (i32, i32) {
    %c0_i32 = arith.constant 0 : i32
    %c0_i32_0 = arith.constant 0 : i32
    %c0_i32_1 = arith.constant 0 : i32
    return %c0_i32, %c0_i32_0 : i32, i32
  }
  func.func @transform_5(%arg0: i32) -> (i32, i32) {
    %c0_i32 = arith.constant 0 : i32
    %c0_i32_0 = arith.constant 0 : i32
    %c0_i32_1 = arith.constant 0 : i32
    return %c0_i32, %c0_i32_0 : i32, i32
  }
  func.func @transform_6(%arg0: i32) -> (i32, i32) {
    %c0_i32 = arith.constant 0 : i32
    %c0_i32_0 = arith.constant 0 : i32
    %c0_i32_1 = arith.constant 0 : i32
    return %c0_i32, %c0_i32_0 : i32, i32
  }
  func.func @transform_7(%arg0: i32) -> (i32, i32) {
    %c0_i32 = arith.constant 0 : i32
    %c0_i32_0 = arith.constant 0 : i32
    %c0_i32_1 = arith.constant 0 : i32
    return %c0_i32, %c0_i32_0 : i32, i32
  }
  func.func @transform_8(%arg0: i32) -> (i32, i32) {
    %c0_i32 = arith.constant 0 : i32
    %c0_i32_0 = arith.constant 0 : i32
    %c0_i32_1 = arith.constant 0 : i32
    return %c0_i32, %c0_i32_0 : i32, i32
  }
  func.func @transform_9(%arg0: i32) -> (i32, i32) {
    %c0_i32 = arith.constant 0 : i32
    %c0_i32_0 = arith.constant 0 : i32
    %c0_i32_1 = arith.constant 0 : i32
    return %c0_i32, %c0_i32_0 : i32, i32
  }
  func.func @transform_10(%arg0: i32) -> (i32, i32) {
    %c0_i32 = arith.constant 0 : i32
    %c0_i32_0 = arith.constant 0 : i32
    %c0_i32_1 = arith.constant 0 : i32
    return %c0_i32, %c0_i32_0 : i32, i32
  }
  func.func @transform_11(%arg0: i32) -> (i32, i32) {
    %c0_i32 = arith.constant 0 : i32
    %c0_i32_0 = arith.constant 0 : i32
    return %arg0, %c0_i32 : i32, i32
  }
}

</mosaic_0001>

<llo_original>
// kernel: model_forward.2
$region0: #{model_forward.2}
  #allocation0 [shape = 'u32[]', space=smem, size = 0x4, offset = 0x4, fixed_abs, tag = 'smem constant byte address 0x4 - core index']
  #allocation1 [shape = 'u32[144,128]{1,0:T(1,128)}', space=vmem, size = 0x12000, scoped, tag = 'internal scratch']
  %s0 = inlined_call_operand.vmem [shape: f32[8,128], index: 0, kind: input, shape index: {}]
  %s1 = inlined_call_operand.vmem [shape: f32[8,128], index: 1, kind: input, shape index: {}]
  %s2 = inlined_call_operand.vmem [shape: bf16[128,128], index: 2, kind: input, shape index: {}]
  %s3 = inlined_call_operand.hbm [shape: f32[1,128], index: 3, kind: input, shape index: {}]
  %s4 = inlined_call_operand.vmem [shape: bf16[128,128], index: 4, kind: input, shape index: {}]
  %s5 = inlined_call_operand.hbm [shape: f32[1,128], index: 5, kind: input, shape index: {}]
  %s6 = inlined_call_operand.hbm [shape: f32[8,128], index: 6, kind: output, shape index: {}]
  %s7 = sld [smem:[#allocation0]]
  $region42: #{model_forward.2} parent=0
    _
  %s9 = ssub.s32 1, %s7
  %s10 = scalar_select 0, %s9, %s7
  $region1: #{model_forward.2} parent=0
    #allocation2 [shape = 'u8[512]{0}', space=vmem, size = 0x400, scoped, tag = 'input window, operand 3, single buffered']
    #allocation3 [shape = 's32[1]{0}', space=sflag, size = 0x4, scoped, tag = 'scoped memory for model_forward.2']
    #allocation4 [shape = 's32[1]{0}', space=sflag, size = 0x4, scoped, tag = 'scoped memory for model_forward.2']
    #allocation5 [shape = 'u8[512]{0}', space=vmem, size = 0x400, scoped, tag = 'input window, operand 5, single buffered']
    #allocation6 [shape = 's32[1]{0}', space=sflag, size = 0x4, scoped, tag = 'scoped memory for model_forward.2']
    #allocation7 [shape = 'u8[4096]{0}', space=vmem, size = 0x1000, scoped, tag = 'output window, operand 0, single buffered']
    %11 = vsyncpa [#allocation3], 0
    %12 = vsyncpa [#allocation6], 0
    %13 = vsyncpa [#allocation4], 0
    // Predicated region
    $region2: #{model_forward.2} parent=1 // pred_check
      _
    $region3: #{model_forward.2} parent=1 // pred_check_branch
      %15 = sbr.rel (0) target = $region5
    $region4: #{model_forward.2} parent=1 // pred_region
      _
    $region5: #{model_forward.2} parent=1 // pred_fallthru
      _
    // Predicated region
    $region6: #{model_forward.2} parent=1 // pred_check
      _
    $region7: #{model_forward.2} parent=1 // pred_check_branch
      %17 = sbr.rel (0) target = $region9
    $region8: #{model_forward.2} parent=1 // pred_region
      _
    $region9: #{model_forward.2} parent=1 // pred_fallthru
      _
    // Predicated region
    $region10: #{model_forward.2} parent=1 // pred_check
      _
    $region11: #{model_forward.2} parent=1 // pred_check_branch
      %19 = sbr.rel (0) target = $region13
    $region12: #{model_forward.2} parent=1 // pred_region
      _
    $region13: #{model_forward.2} parent=1 // pred_fallthru
      _
    // Predicated region
    $region14: #{model_forward.2} parent=1 // pred_check
      _
    $region15: #{model_forward.2} parent=1 // pred_check_branch
      %21 = sbr.rel (0) target = $region17
    $region16: #{model_forward.2} parent=1 // pred_region
      %s23 = ssub.s32 16, 16
      %24 = vsyncadd [#allocation3], %s23
      %s26 = sshll.u32 [#allocation2], 4
      %s27 = int_to_ptr.vmem [resolvable:$true] %s26
      %29 = dma.hbm_to_vmem [thread:$0]  %s3, 16, %s27, [#allocation3]
    $region17: #{model_forward.2} parent=1 // pred_fallthru
      _
    // Predicated region
    $region18: #{model_forward.2} parent=1 // pred_check
      _
    $region19: #{model_forward.2} parent=1 // pred_check_branch
      %31 = sbr.rel (0) target = $region21
    $region20: #{model_forward.2} parent=1 // pred_region
      _
    $region21: #{model_forward.2} parent=1 // pred_fallthru
      _
    // Predicated region
    $region22: #{model_forward.2} parent=1 // pred_check
      _
    $region23: #{model_forward.2} parent=1 // pred_check_branch
      %33 = sbr.rel (0) target = $region25
    $region24: #{model_forward.2} parent=1 // pred_region
      %s35 = ssub.s32 16, 16
      %36 = vsyncadd [#allocation6], %s35
      %s38 = sshll.u32 [#allocation5], 4
      %s39 = int_to_ptr.vmem [resolvable:$true] %s38
      %41 = dma.hbm_to_vmem [thread:$0]  %s5, 16, %s39, [#allocation6]
    $region25: #{model_forward.2} parent=1 // pred_fallthru
      _
    // Predicated region
    $region26: #{model_forward.2} parent=1 // pred_check
      _
    $region27: #{model_forward.2} parent=1 // pred_check_branch
      %43 = sbr.rel (0) target = $region29
    $region28: #{model_forward.2} parent=1 // pred_region
      %44 = dma.done [#allocation3], 16
    $region29: #{model_forward.2} parent=1 // pred_fallthru
      _
    // Predicated region
    $region30: #{model_forward.2} parent=1 // pred_check
      _
    $region31: #{model_forward.2} parent=1 // pred_check_branch
      %46 = sbr.rel (0) target = $region33
    $region32: #{model_forward.2} parent=1 // pred_region
      %47 = dma.done [#allocation6], 16
    $region33: #{model_forward.2} parent=1 // pred_fallthru
      _
    %v49 = vld [vmem:[%s0] sm:$0xff]
    %vm50 = vcmp.gt.f32.partialorder %v49, 0.0
    %v51 = vmin.f32 %v49, 0.0
    %v52 = vmul.f32 %v51, 1.442695
    %v53 = vpow.pop %v52
    %v54 = vsub.f32 %v53, 1.0
    %v55 = vsel %vm50, %v49, %v54
    %v56 = vpack.c.bf16 %v55, %v55
    %v57 = vld [vmem:[%s4] sm:$0xf]
    %v58 = vld [vmem:[%s4 + $0x4] sm:$0xf]
    %v59 = vld [vmem:[%s4 + $0x8] sm:$0xf]
    %v60 = vld [vmem:[%s4 + $0xc] sm:$0xf]
    %v61 = vld [vmem:[%s4 + $0x10] sm:$0xf]
    %v62 = vld [vmem:[%s4 + $0x14] sm:$0xf]
    %v63 = vld [vmem:[%s4 + $0x18] sm:$0xf]
    %v64 = vld [vmem:[%s4 + $0x1c] sm:$0xf]
    %v65 = vld [vmem:[%s4 + $0x20] sm:$0xf]
    %v66 = vld [vmem:[%s4 + $0x24] sm:$0xf]
    %v67 = vld [vmem:[%s4 + $0x28] sm:$0xf]
    %v68 = vld [vmem:[%s4 + $0x2c] sm:$0xf]
    %v69 = vld [vmem:[%s4 + $0x30] sm:$0xf]
    %v70 = vld [vmem:[%s4 + $0x34] sm:$0xf]
    %v71 = vld [vmem:[%s4 + $0x38] sm:$0xf]
    %v72 = vld [vmem:[%s4 + $0x3c] sm:$0xf]
    %v73 = vld [vmem:[#allocation5] sm:$0x1]
    %v75 = vlaneseq
    %v76 = vshrl.u32 %v75, 7
    %v77 = vsub.s32 0, %v76
    %v78 = vrot.slane %v73, %v77
    %v96 = vunpack.c.l.b16 %v57
    %v97 = vunpack.c.l.b16 %v58
    %v98 = vunpack.c.l.b16 %v59
    %v99 = vunpack.c.l.b16 %v60
    %v100 = vunpack.c.l.b16 %v61
    %v101 = vunpack.c.l.b16 %v62
    %v102 = vunpack.c.l.b16 %v63
    %v103 = vunpack.c.l.b16 %v64
    %v104 = vunpack.c.l.b16 %v65
    %v105 = vunpack.c.l.b16 %v66
    %v106 = vunpack.c.l.b16 %v67
    %v107 = vunpack.c.l.b16 %v68
    %v108 = vunpack.c.l.b16 %v69
    %v109 = vunpack.c.l.b16 %v70
    %v110 = vunpack.c.l.b16 %v71
    %v111 = vunpack.c.l.b16 %v72
    %v112 = vpack.c.b16 %v97, %v96
    %v113 = vpack.c.b16 %v99, %v98
    %v114 = vpack.c.b16 %v101, %v100
    %v115 = vpack.c.b16 %v103, %v102
    %v116 = vpack.c.b16 %v105, %v104
    %v117 = vpack.c.b16 %v107, %v106
    %v118 = vpack.c.b16 %v109, %v108
    %v119 = vpack.c.b16 %v111, %v110
    %128 = vmatprep.subr.bf16.mxu0 0
    %129 = vmatpush1.bf16.msra.mxu0 %v112
    %130 = vmatprep.subr.bf16.mxu0 0
    %131 = vmatpush1.bf16.msra.mxu0 %v113
    %132 = vmatprep.subr.bf16.mxu0 0
    %133 = vmatpush1.bf16.msra.mxu0 %v114
    %134 = vmatprep.subr.bf16.mxu0 0
    %135 = vmatpush1.bf16.msra.mxu0 %v115
    %136 = vmatprep.subr.bf16.mxu0 0
    %137 = vmatpush1.bf16.msra.mxu0 %v116
    %138 = vmatprep.subr.bf16.mxu0 0
    %139 = vmatpush1.bf16.msra.mxu0 %v117
    %140 = vmatprep.subr.bf16.mxu0 0
    %141 = vmatpush1.bf16.msra.mxu0 %v118
    %142 = vmatprep.subr.bf16.mxu0 0
    %143 = vmatpush1.bf16.msra.mxu0 %v119
    %144 = vmatprep.subr.bf16.mxu0 0
    %145 = vmatpush1.bf16.msra.mxu0 0
    %146 = vmatprep.subr.bf16.mxu0 0
    %147 = vmatpush1.bf16.msra.mxu0 0
    %148 = vmatprep.subr.bf16.mxu0 0
    %149 = vmatpush1.bf16.msra.mxu0 0
    %150 = vmatprep.subr.bf16.mxu0 0
    %151 = vmatpush1.bf16.msra.mxu0 0
    %152 = vmatprep.subr.bf16.mxu0 0
    %153 = vmatpush1.bf16.msra.mxu0 0
    %154 = vmatprep.subr.bf16.mxu0 0
    %155 = vmatpush1.bf16.msra.mxu0 0
    %156 = vmatprep.subr.bf16.mxu0 0
    %157 = vmatpush1.bf16.msra.mxu0 0
    %158 = vmatprep.subr.bf16.mxu0 0
    %159 = vmatpush1.bf16.msra.mxu0 0
    %160 = vmatprep.mubr.bf16.mxu0 0
    %161 = vmatmul.mubr.bf16.gmra.mrb[0].mxu0 %v56
    %v162 = vpop.f32.mrb[0].mxu0
    %v163 = vadd.f32 %v78, %v162
    %v164 = vpop.f32.mrb[0].mxu0
    %v165 = vpop.f32.mrb[0].mxu0
    %v166 = vpop.f32.mrb[0].mxu0
    %167 = vdwg.mxu0
    %vm168 = vcmp.gt.f32.partialorder %v163, 0.0
    %v169 = vmin.f32 %v163, 0.0
    %v170 = vmul.f32 %v169, 1.442695
    %v171 = vpow.pop %v170
    %v172 = vsub.f32 %v171, 1.0
    %v173 = vsel %vm168, %v163, %v172
    %v174 = vld [vmem:[%s1] sm:$0xff]
    %v175 = vpack.c.bf16 %v174, %v174
    %v176 = vld [vmem:[%s2] sm:$0xf]
    %v177 = vld [vmem:[%s2 + $0x4] sm:$0xf]
    %v178 = vld [vmem:[%s2 + $0x8] sm:$0xf]
    %v179 = vld [vmem:[%s2 + $0xc] sm:$0xf]
    %v180 = vld [vmem:[%s2 + $0x10] sm:$0xf]
    %v181 = vld [vmem:[%s2 + $0x14] sm:$0xf]
    %v182 = vld [vmem:[%s2 + $0x18] sm:$0xf]
    %v183 = vld [vmem:[%s2 + $0x1c] sm:$0xf]
    %v184 = vld [vmem:[%s2 + $0x20] sm:$0xf]
    %v185 = vld [vmem:[%s2 + $0x24] sm:$0xf]
    %v186 = vld [vmem:[%s2 + $0x28] sm:$0xf]
    %v187 = vld [vmem:[%s2 + $0x2c] sm:$0xf]
    %v188 = vld [vmem:[%s2 + $0x30] sm:$0xf]
    %v189 = vld [vmem:[%s2 + $0x34] sm:$0xf]
    %v190 = vld [vmem:[%s2 + $0x38] sm:$0xf]
    %v191 = vld [vmem:[%s2 + $0x3c] sm:$0xf]
    %v192 = vld [vmem:[#allocation2] sm:$0x1]
    %v194 = vlaneseq
    %v195 = vshrl.u32 %v194, 7
    %v196 = vsub.s32 0, %v195
    %v197 = vrot.slane %v192, %v196
    %v215 = vunpack.c.l.b16 %v176
    %v216 = vunpack.c.l.b16 %v177
    %v217 = vunpack.c.l.b16 %v178
    %v218 = vunpack.c.l.b16 %v179
    %v219 = vunpack.c.l.b16 %v180
    %v220 = vunpack.c.l.b16 %v181
    %v221 = vunpack.c.l.b16 %v182
    %v222 = vunpack.c.l.b16 %v183
    %v223 = vunpack.c.l.b16 %v184
    %v224 = vunpack.c.l.b16 %v185
    %v225 = vunpack.c.l.b16 %v186
    %v226 = vunpack.c.l.b16 %v187
    %v227 = vunpack.c.l.b16 %v188
    %v228 = vunpack.c.l.b16 %v189
    %v229 = vunpack.c.l.b16 %v190
    %v230 = vunpack.c.l.b16 %v191
    %v231 = vpack.c.b16 %v216, %v215
    %v232 = vpack.c.b16 %v218, %v217
    %v233 = vpack.c.b16 %v220, %v219
    %v234 = vpack.c.b16 %v222, %v221
    %v235 = vpack.c.b16 %v224, %v223
    %v236 = vpack.c.b16 %v226, %v225
    %v237 = vpack.c.b16 %v228, %v227
    %v238 = vpack.c.b16 %v230, %v229
    %247 = vmatprep.subr.bf16.mxu0 0
    %248 = vmatpush1.bf16.msra.mxu0 %v231
    %249 = vmatprep.subr.bf16.mxu0 0
    %250 = vmatpush1.bf16.msra.mxu0 %v232
    %251 = vmatprep.subr.bf16.mxu0 0
    %252 = vmatpush1.bf16.msra.mxu0 %v233
    %253 = vmatprep.subr.bf16.mxu0 0
    %254 = vmatpush1.bf16.msra.mxu0 %v234
    %255 = vmatprep.subr.bf16.mxu0 0
    %256 = vmatpush1.bf16.msra.mxu0 %v235
    %257 = vmatprep.subr.bf16.mxu0 0
    %258 = vmatpush1.bf16.msra.mxu0 %v236
    %259 = vmatprep.subr.bf16.mxu0 0
    %260 = vmatpush1.bf16.msra.mxu0 %v237
    %261 = vmatprep.subr.bf16.mxu0 0
    %262 = vmatpush1.bf16.msra.mxu0 %v238
    %263 = vmatprep.subr.bf16.mxu0 0
    %264 = vmatpush1.bf16.msra.mxu0 0
    %265 = vmatprep.subr.bf16.mxu0 0
    %266 = vmatpush1.bf16.msra.mxu0 0
    %267 = vmatprep.subr.bf16.mxu0 0
    %268 = vmatpush1.bf16.msra.mxu0 0
    %269 = vmatprep.subr.bf16.mxu0 0
    %270 = vmatpush1.bf16.msra.mxu0 0
    %271 = vmatprep.subr.bf16.mxu0 0
    %272 = vmatpush1.bf16.msra.mxu0 0
    %273 = vmatprep.subr.bf16.mxu0 0
    %274 = vmatpush1.bf16.msra.mxu0 0
    %275 = vmatprep.subr.bf16.mxu0 0
    %276 = vmatpush1.bf16.msra.mxu0 0
    %277 = vmatprep.subr.bf16.mxu0 0
    %278 = vmatpush1.bf16.msra.mxu0 0
    %279 = vmatprep.mubr.bf16.mxu0 0
    %280 = vmatmul.mubr.bf16.gmra.mrb[0].mxu0 %v175
    %v281 = vpop.f32.mrb[0].mxu0
    %v282 = vadd.f32 %v197, %v281
    %v283 = vpop.f32.mrb[0].mxu0
    %v284 = vpop.f32.mrb[0].mxu0
    %v285 = vpop.f32.mrb[0].mxu0
    %286 = vdwg.mxu0
    %vm287 = vcmp.gt.f32.partialorder %v282, 0.0
    %v288 = vmin.f32 %v282, 0.0
    %v289 = vmul.f32 %v288, 1.442695
    %v290 = vpow.pop %v289
    %v291 = vsub.f32 %v290, 1.0
    %v292 = vsel %vm287, %v282, %v291
    %v293 = vpack.c.bf16 %v292, %v292
    %294 = vmatprep.subr.bf16.mxu0 0
    %295 = vmatpush1.bf16.msra.mxu0 %v112
    %296 = vmatprep.subr.bf16.mxu0 0
    %297 = vmatpush1.bf16.msra.mxu0 %v113
    %298 = vmatprep.subr.bf16.mxu0 0
    %299 = vmatpush1.bf16.msra.mxu0 %v114
    %300 = vmatprep.subr.bf16.mxu0 0
    %301 = vmatpush1.bf16.msra.mxu0 %v115
    %302 = vmatprep.subr.bf16.mxu0 0
    %303 = vmatpush1.bf16.msra.mxu0 %v116
    %304 = vmatprep.subr.bf16.mxu0 0
    %305 = vmatpush1.bf16.msra.mxu0 %v117
    %306 = vmatprep.subr.bf16.mxu0 0
    %307 = vmatpush1.bf16.msra.mxu0 %v118
    %308 = vmatprep.subr.bf16.mxu0 0
    %309 = vmatpush1.bf16.msra.mxu0 %v119
    %310 = vmatprep.subr.bf16.mxu0 0
    %311 = vmatpush1.bf16.msra.mxu0 0
    %312 = vmatprep.subr.bf16.mxu0 0
    %313 = vmatpush1.bf16.msra.mxu0 0
    %314 = vmatprep.subr.bf16.mxu0 0
    %315 = vmatpush1.bf16.msra.mxu0 0
    %316 = vmatprep.subr.bf16.mxu0 0
    %317 = vmatpush1.bf16.msra.mxu0 0
    %318 = vmatprep.subr.bf16.mxu0 0
    %319 = vmatpush1.bf16.msra.mxu0 0
    %320 = vmatprep.subr.bf16.mxu0 0
    %321 = vmatpush1.bf16.msra.mxu0 0
    %322 = vmatprep.subr.bf16.mxu0 0
    %323 = vmatpush1.bf16.msra.mxu0 0
    %324 = vmatprep.subr.bf16.mxu0 0
    %325 = vmatpush1.bf16.msra.mxu0 0
    %326 = vmatprep.mubr.bf16.mxu0 0
    %327 = vmatmul.mubr.bf16.gmra.mrb[0].mxu0 %v293
    %v328 = vpop.f32.mrb[0].mxu0
    %v329 = vadd.f32 %v78, %v328
    %v330 = vpop.f32.mrb[0].mxu0
    %v331 = vpop.f32.mrb[0].mxu0
    %v332 = vpop.f32.mrb[0].mxu0
    %333 = vdwg.mxu0
    %vm334 = vcmp.gt.f32.partialorder %v329, 0.0
    %v335 = vmin.f32 %v329, 0.0
    %v336 = vmul.f32 %v335, 1.442695
    %v337 = vpow.pop %v336
    %v338 = vsub.f32 %v337, 1.0
    %v339 = vsel %vm334, %v329, %v338
    %v340 = vadd.f32 %v173, %v339
    %341 = vst [vmem:[#allocation7] sm:$0xff] %v340
    // Predicated region
    $region34: #{model_forward.2} parent=1 // pred_check
      _
    $region35: #{model_forward.2} parent=1 // pred_check_branch
      %343 = sbr.rel (0) target = $region37
    $region36: #{model_forward.2} parent=1 // pred_region
      %s345 = ssub.s32 128, 128
      %346 = vsyncadd [#allocation4], %s345
      %s348 = sshll.u32 [#allocation7], 4
      %s349 = int_to_ptr.vmem [resolvable:$true] %s348
      %351 = dma.vmem_to_hbm [thread:$0]  %s349, 128, %s6, [#allocation4]
    $region37: #{model_forward.2} parent=1 // pred_fallthru
      _
    // Predicated region
    $region38: #{model_forward.2} parent=1 // pred_check
      _
    $region39: #{model_forward.2} parent=1 // pred_check_branch
      %353 = sbr.rel (0) target = $region41
    $region40: #{model_forward.2} parent=1 // pred_region
      %354 = dma.done [#allocation4], 128
    $region41: #{model_forward.2} parent=1 // pred_fallthru
      _
    %355 = vsyncpa [#allocation3], 1
    %356 = vsyncpa [#allocation6], 1
    %357 = vsyncpa [#allocation4], 1

// kernel: model_forward.3
$region0: #{model_forward.3}
  #allocation0 [shape = 'u32[]', space=smem, size = 0x4, offset = 0x4, fixed_abs, tag = 'smem constant byte address 0x4 - core index']
  #allocation1 [shape = 'u32[144,128]{1,0:T(1,128)}', space=vmem, size = 0x12000, scoped, tag = 'internal scratch']
  %s0 = inlined_call_operand.vmem [shape: f32[24,128], index: 0, kind: input, shape index: {}]
  %s1 = inlined_call_operand.vmem [shape: bf16[128,128], index: 1, kind: input, shape index: {}]
  %s2 = inlined_call_operand.vmem [shape: f32[1,128], index: 2, kind: input, shape index: {}]
  %s3 = inlined_call_operand.vmem [shape: bf16[128,128], index: 3, kind: input, shape index: {}]
  %s4 = inlined_call_operand.vmem [shape: f32[1,128], index: 4, kind: input, shape index: {}]
  %s5 = inlined_call_operand.vmem [shape: bf16[128,128], index: 5, kind: input, shape index: {}]
  %s6 = inlined_call_operand.vmem [shape: f32[1,128], index: 6, kind: input, shape index: {}]
  %s7 = inlined_call_operand.vmem [shape: bf16[128,128], index: 7, kind: input, shape index: {}]
  %s8 = inlined_call_operand.vmem [shape: f32[1,128], index: 8, kind: input, shape index: {}]
  %s9 = inlined_call_operand.vmem [shape: bf16[128,128], index: 9, kind: input, shape index: {}]
  %s10 = inlined_call_operand.vmem [shape: f32[1,128], index: 10, kind: input, shape index: {}]
  %s11 = inlined_call_operand.vmem [shape: f32[24,128], index: 11, kind: output, shape index: {}]
  %s12 = sld [smem:[#allocation0]]
  $region54: #{model_forward.3} parent=0
    _
  %s14 = ssub.s32 1, %s12
  %s15 = scalar_select 0, %s14, %s12
  // Predicated region
  $region2: #{model_forward.3} parent=0 // pred_check
    _
  $region3: #{model_forward.3} parent=0 // pred_check_branch
    %17 = sbr.rel (0) target = $region5
  $region4: #{model_forward.3} parent=0 // pred_region
    _
  $region5: #{model_forward.3} parent=0 // pred_fallthru
    _
  // Predicated region
  $region6: #{model_forward.3} parent=0 // pred_check
    _
  $region7: #{model_forward.3} parent=0 // pred_check_branch
    %19 = sbr.rel (0) target = $region9
  $region8: #{model_forward.3} parent=0 // pred_region
    _
  $region9: #{model_forward.3} parent=0 // pred_fallthru
    _
  // Predicated region
  $region10: #{model_forward.3} parent=0 // pred_check
    _
  $region11: #{model_forward.3} parent=0 // pred_check_branch
    %21 = sbr.rel (0) target = $region13
  $region12: #{model_forward.3} parent=0 // pred_region
    _
  $region13: #{model_forward.3} parent=0 // pred_fallthru
    _
  // Predicated region
  $region14: #{model_forward.3} parent=0 // pred_check
    _
  $region15: #{model_forward.3} parent=0 // pred_check_branch
    %23 = sbr.rel (0) target = $region17
  $region16: #{model_forward.3} parent=0 // pred_region
    _
  $region17: #{model_forward.3} parent=0 // pred_fallthru
    _
  // Predicated region
  $region18: #{model_forward.3} parent=0 // pred_check
    _
  $region19: #{model_forward.3} parent=0 // pred_check_branch
    %25 = sbr.rel (0) target = $region21
  $region20: #{model_forward.3} parent=0 // pred_region
    _
  $region21: #{model_forward.3} parent=0 // pred_fallthru
    _
  // Predicated region
  $region22: #{model_forward.3} parent=0 // pred_check
    _
  $region23: #{model_forward.3} parent=0 // pred_check_branch
    %27 = sbr.rel (0) target = $region25
  $region24: #{model_forward.3} parent=0 // pred_region
    _
  $region25: #{model_forward.3} parent=0 // pred_fallthru
    _
  // Predicated region
  $region26: #{model_forward.3} parent=0 // pred_check
    _
  $region27: #{model_forward.3} parent=0 // pred_check_branch
    %29 = sbr.rel (0) target = $region29
  $region28: #{model_forward.3} parent=0 // pred_region
    _
  $region29: #{model_forward.3} parent=0 // pred_fallthru
    _
  // Predicated region
  $region30: #{model_forward.3} parent=0 // pred_check
    _
  $region31: #{model_forward.3} parent=0 // pred_check_branch
    %31 = sbr.rel (0) target = $region33
  $region32: #{model_forward.3} parent=0 // pred_region
    _
  $region33: #{model_forward.3} parent=0 // pred_fallthru
    _
  // Predicated region
  $region34: #{model_forward.3} parent=0 // pred_check
    _
  $region35: #{model_forward.3} parent=0 // pred_check_branch
    %33 = sbr.rel (0) target = $region37
  $region36: #{model_forward.3} parent=0 // pred_region
    _
  $region37: #{model_forward.3} parent=0 // pred_fallthru
    _
  // Predicated region
  $region38: #{model_forward.3} parent=0 // pred_check
    _
  $region39: #{model_forward.3} parent=0 // pred_check_branch
    %35 = sbr.rel (0) target = $region41
  $region40: #{model_forward.3} parent=0 // pred_region
    _
  $region41: #{model_forward.3} parent=0 // pred_fallthru
    _
  // Predicated region
  $region42: #{model_forward.3} parent=0 // pred_check
    _
  $region43: #{model_forward.3} parent=0 // pred_check_branch
    %37 = sbr.rel (0) target = $region45
  $region44: #{model_forward.3} parent=0 // pred_region
    _
  $region45: #{model_forward.3} parent=0 // pred_fallthru
    _
  %v39 = vld [vmem:[%s0] sm:$0xff]
  %v40 = vld [vmem:[%s0 + $0x8] sm:$0xff]
  %v41 = vld [vmem:[%s0 + $0x10] sm:$0xff]
  %v42 = vpack.c.bf16 %v40, %v39
  %v43 = vpack.c.bf16 %v41, %v41
  %v44 = vld [vmem:[%s1] sm:$0xf]
  %v45 = vld [vmem:[%s1 + $0x4] sm:$0xf]
  %v46 = vld [vmem:[%s1 + $0x8] sm:$0xf]
  %v47 = vld [vmem:[%s1 + $0xc] sm:$0xf]
  %v48 = vld [vmem:[%s1 + $0x10] sm:$0xf]
  %v49 = vld [vmem:[%s1 + $0x14] sm:$0xf]
  %v50 = vld [vmem:[%s1 + $0x18] sm:$0xf]
  %v51 = vld [vmem:[%s1 + $0x1c] sm:$0xf]
  %v52 = vld [vmem:[%s1 + $0x20] sm:$0xf]
  %v53 = vld [vmem:[%s1 + $0x24] sm:$0xf]
  %v54 = vld [vmem:[%s1 + $0x28] sm:$0xf]
  %v55 = vld [vmem:[%s1 + $0x2c] sm:$0xf]
  %v56 = vld [vmem:[%s1 + $0x30] sm:$0xf]
  %v57 = vld [vmem:[%s1 + $0x34] sm:$0xf]
  %v58 = vld [vmem:[%s1 + $0x38] sm:$0xf]
  %v59 = vld [vmem:[%s1 + $0x3c] sm:$0xf]
  %v60 = vld [vmem:[%s2] sm:$0x1]
  %v62 = vlaneseq
  %v63 = vshrl.u32 %v62, 7
  %v64 = vsub.s32 0, %v63
  %v65 = vrot.slane %v60, %v64
  %v83 = vunpack.c.l.b16 %v44
  %v84 = vunpack.c.l.b16 %v45
  %v85 = vunpack.c.l.b16 %v46
  %v86 = vunpack.c.l.b16 %v47
  %v87 = vunpack.c.l.b16 %v48
  %v88 = vunpack.c.l.b16 %v49
  %v89 = vunpack.c.l.b16 %v50
  %v90 = vunpack.c.l.b16 %v51
  %v91 = vunpack.c.l.b16 %v52
  %v92 = vunpack.c.l.b16 %v53
  %v93 = vunpack.c.l.b16 %v54
  %v94 = vunpack.c.l.b16 %v55
  %v95 = vunpack.c.l.b16 %v56
  %v96 = vunpack.c.l.b16 %v57
  %v97 = vunpack.c.l.b16 %v58
  %v98 = vunpack.c.l.b16 %v59
  %v99 = vpack.c.b16 %v84, %v83
  %v100 = vpack.c.b16 %v86, %v85
  %v101 = vpack.c.b16 %v88, %v87
  %v102 = vpack.c.b16 %v90, %v89
  %v103 = vpack.c.b16 %v92, %v91
  %v104 = vpack.c.b16 %v94, %v93
  %v105 = vpack.c.b16 %v96, %v95
  %v106 = vpack.c.b16 %v98, %v97
  %115 = vmatprep.subr.bf16.mxu0 0
  %116 = vmatpush1.bf16.msra.mxu0 %v99
  %117 = vmatprep.subr.bf16.mxu0 0
  %118 = vmatpush1.bf16.msra.mxu0 %v100
  %119 = vmatprep.subr.bf16.mxu0 0
  %120 = vmatpush1.bf16.msra.mxu0 %v101
  %121 = vmatprep.subr.bf16.mxu0 0
  %122 = vmatpush1.bf16.msra.mxu0 %v102
  %123 = vmatprep.subr.bf16.mxu0 0
  %124 = vmatpush1.bf16.msra.mxu0 %v103
  %125 = vmatprep.subr.bf16.mxu0 0
  %126 = vmatpush1.bf16.msra.mxu0 %v104
  %127 = vmatprep.subr.bf16.mxu0 0
  %128 = vmatpush1.bf16.msra.mxu0 %v105
  %129 = vmatprep.subr.bf16.mxu0 0
  %130 = vmatpush1.bf16.msra.mxu0 %v106
  %131 = vmatprep.subr.bf16.mxu0 0
  %132 = vmatpush1.bf16.msra.mxu0 0
  %133 = vmatprep.subr.bf16.mxu0 0
  %134 = vmatpush1.bf16.msra.mxu0 0
  %135 = vmatprep.subr.bf16.mxu0 0
  %136 = vmatpush1.bf16.msra.mxu0 0
  %137 = vmatprep.subr.bf16.mxu0 0
  %138 = vmatpush1.bf16.msra.mxu0 0
  %139 = vmatprep.subr.bf16.mxu0 0
  %140 = vmatpush1.bf16.msra.mxu0 0
  %141 = vmatprep.subr.bf16.mxu0 0
  %142 = vmatpush1.bf16.msra.mxu0 0
  %143 = vmatprep.subr.bf16.mxu0 0
  %144 = vmatpush1.bf16.msra.mxu0 0
  %145 = vmatprep.subr.bf16.mxu0 0
  %146 = vmatpush1.bf16.msra.mxu0 0
  %147 = vmatprep.mubr.bf16.mxu0 0
  %148 = vmatmul.mubr.bf16.gmra.mrb[0].mxu0 %v42
  %v149 = vpop.f32.mrb[0].mxu0
  %v150 = vadd.f32 %v65, %v149
  %v151 = vpop.f32.mrb[0].mxu0
  %v152 = vpop.f32.mrb[0].mxu0
  %v153 = vadd.f32 %v65, %v152
  %v154 = vpop.f32.mrb[0].mxu0
  %155 = vmatprep.mubr.bf16.mxu0 0
  %156 = vmatmul.mubr.bf16.gmra.mrb[0].mxu0 %v43
  %v157 = vpop.f32.mrb[0].mxu0
  %v158 = vadd.f32 %v65, %v157
  %v159 = vpop.f32.mrb[0].mxu0
  %v160 = vpop.f32.mrb[0].mxu0
  %v161 = vpop.f32.mrb[0].mxu0
  %162 = vdwg.mxu0
  %vm163 = vcmp.gt.f32.partialorder %v150, 0.0
  %vm164 = vcmp.gt.f32.partialorder %v153, 0.0
  %vm165 = vcmp.gt.f32.partialorder %v158, 0.0
  %v166 = vmin.f32 %v150, 0.0
  %v167 = vmin.f32 %v153, 0.0
  %v168 = vmin.f32 %v158, 0.0
  %v169 = vmul.f32 %v166, 1.442695
  %v170 = vpow.pop %v169
  %v171 = vmul.f32 %v167, 1.442695
  %v172 = vpow.pop %v171
  %v173 = vmul.f32 %v168, 1.442695
  %v174 = vpow.pop %v173
  %v175 = vsub.f32 %v170, 1.0
  %v176 = vsub.f32 %v172, 1.0
  %v177 = vsub.f32 %v174, 1.0
  %v178 = vsel %vm163, %v150, %v175
  %v179 = vsel %vm164, %v153, %v176
  %v180 = vsel %vm165, %v158, %v177
  %v181 = vpack.c.bf16 %v179, %v178
  %v182 = vpack.c.bf16 %v180, %v180
  %v183 = vld [vmem:[%s3] sm:$0xf]
  %v184 = vld [vmem:[%s3 + $0x4] sm:$0xf]
  %v185 = vld [vmem:[%s3 + $0x8] sm:$0xf]
  %v186 = vld [vmem:[%s3 + $0xc] sm:$0xf]
  %v187 = vld [vmem:[%s3 + $0x10] sm:$0xf]
  %v188 = vld [vmem:[%s3 + $0x14] sm:$0xf]
  %v189 = vld [vmem:[%s3 + $0x18] sm:$0xf]
  %v190 = vld [vmem:[%s3 + $0x1c] sm:$0xf]
  %v191 = vld [vmem:[%s3 + $0x20] sm:$0xf]
  %v192 = vld [vmem:[%s3 + $0x24] sm:$0xf]
  %v193 = vld [vmem:[%s3 + $0x28] sm:$0xf]
  %v194 = vld [vmem:[%s3 + $0x2c] sm:$0xf]
  %v195 = vld [vmem:[%s3 + $0x30] sm:$0xf]
  %v196 = vld [vmem:[%s3 + $0x34] sm:$0xf]
  %v197 = vld [vmem:[%s3 + $0x38] sm:$0xf]
  %v198 = vld [vmem:[%s3 + $0x3c] sm:$0xf]
  %v199 = vld [vmem:[%s4] sm:$0x1]
  %v201 = vlaneseq
  %v202 = vshrl.u32 %v201, 7
  %v203 = vsub.s32 0, %v202
  %v204 = vrot.slane %v199, %v203
  %v222 = vunpack.c.l.b16 %v183
  %v223 = vunpack.c.l.b16 %v184
  %v224 = vunpack.c.l.b16 %v185
  %v225 = vunpack.c.l.b16 %v186
  %v226 = vunpack.c.l.b16 %v187
  %v227 = vunpack.c.l.b16 %v188
  %v228 = vunpack.c.l.b16 %v189
  %v229 = vunpack.c.l.b16 %v190
  %v230 = vunpack.c.l.b16 %v191
  %v231 = vunpack.c.l.b16 %v192
  %v232 = vunpack.c.l.b16 %v193
  %v233 = vunpack.c.l.b16 %v194
  %v234 = vunpack.c.l.b16 %v195
  %v235 = vunpack.c.l.b16 %v196
  %v236 = vunpack.c.l.b16 %v197
  %v237 = vunpack.c.l.b16 %v198
  %v238 = vpack.c.b16 %v223, %v222
  %v239 = vpack.c.b16 %v225, %v224
  %v240 = vpack.c.b16 %v227, %v226
  %v241 = vpack.c.b16 %v229, %v228
  %v242 = vpack.c.b16 %v231, %v230
  %v243 = vpack.c.b16 %v233, %v232
  %v244 = vpack.c.b16 %v235, %v234
  %v245 = vpack.c.b16 %v237, %v236
  %254 = vmatprep.subr.bf16.mxu0 0
  %255 = vmatpush1.bf16.msra.mxu0 %v238
  %256 = vmatprep.subr.bf16.mxu0 0
  %257 = vmatpush1.bf16.msra.mxu0 %v239
  %258 = vmatprep.subr.bf16.mxu0 0
  %259 = vmatpush1.bf16.msra.mxu0 %v240
  %260 = vmatprep.subr.bf16.mxu0 0
  %261 = vmatpush1.bf16.msra.mxu0 %v241
  %262 = vmatprep.subr.bf16.mxu0 0
  %263 = vmatpush1.bf16.msra.mxu0 %v242
  %264 = vmatprep.subr.bf16.mxu0 0
  %265 = vmatpush1.bf16.msra.mxu0 %v243
  %266 = vmatprep.subr.bf16.mxu0 0
  %267 = vmatpush1.bf16.msra.mxu0 %v244
  %268 = vmatprep.subr.bf16.mxu0 0
  %269 = vmatpush1.bf16.msra.mxu0 %v245
  %270 = vmatprep.subr.bf16.mxu0 0
  %271 = vmatpush1.bf16.msra.mxu0 0
  %272 = vmatprep.subr.bf16.mxu0 0
  %273 = vmatpush1.bf16.msra.mxu0 0
  %274 = vmatprep.subr.bf16.mxu0 0
  %275 = vmatpush1.bf16.msra.mxu0 0
  %276 = vmatprep.subr.bf16.mxu0 0
  %277 = vmatpush1.bf16.msra.mxu0 0
  %278 = vmatprep.subr.bf16.mxu0 0
  %279 = vmatpush1.bf16.msra.mxu0 0
  %280 = vmatprep.subr.bf16.mxu0 0
  %281 = vmatpush1.bf16.msra.mxu0 0
  %282 = vmatprep.subr.bf16.mxu0 0
  %283 = vmatpush1.bf16.msra.mxu0 0
  %284 = vmatprep.subr.bf16.mxu0 0
  %285 = vmatpush1.bf16.msra.mxu0 0
  %286 = vmatprep.mubr.bf16.mxu0 0
  %287 = vmatmul.mubr.bf16.gmra.mrb[0].mxu0 %v181
  %v288 = vpop.f32.mrb[0].mxu0
  %v289 = vadd.f32 %v204, %v288
  %v290 = vpop.f32.mrb[0].mxu0
  %v291 = vpop.f32.mrb[0].mxu0
  %v292 = vadd.f32 %v204, %v291
  %v293 = vpop.f32.mrb[0].mxu0
  %294 = vmatprep.mubr.bf16.mxu0 0
  %295 = vmatmul.mubr.bf16.gmra.mrb[0].mxu0 %v182
  %v296 = vpop.f32.mrb[0].mxu0
  %v297 = vadd.f32 %v204, %v296
  %v298 = vpop.f32.mrb[0].mxu0
  %v299 = vpop.f32.mrb[0].mxu0
  %v300 = vpop.f32.mrb[0].mxu0
  %301 = vdwg.mxu0
  %vm302 = vcmp.gt.f32.partialorder %v289, 0.0
  %vm303 = vcmp.gt.f32.partialorder %v292, 0.0
  %vm304 = vcmp.gt.f32.partialorder %v297, 0.0
  %v305 = vmin.f32 %v289, 0.0
  %v306 = vmin.f32 %v292, 0.0
  %v307 = vmin.f32 %v297, 0.0
  %v308 = vmul.f32 %v305, 1.442695
  %v309 = vpow.pop %v308
  %v310 = vmul.f32 %v306, 1.442695
  %v311 = vpow.pop %v310
  %v312 = vmul.f32 %v307, 1.442695
  %v313 = vpow.pop %v312
  %v314 = vsub.f32 %v309, 1.0
  %v315 = vsub.f32 %v311, 1.0
  %v316 = vsub.f32 %v313, 1.0
  %v317 = vsel %vm302, %v289, %v314
  %v318 = vsel %vm303, %v292, %v315
  %v319 = vsel %vm304, %v297, %v316
  %v320 = vpack.c.bf16 %v318, %v317
  %v321 = vpack.c.bf16 %v319, %v319
  %v322 = vld [vmem:[%s5] sm:$0xf]
  %v323 = vld [vmem:[%s5 + $0x4] sm:$0xf]
  %v324 = vld [vmem:[%s5 + $0x8] sm:$0xf]
  %v325 = vld [vmem:[%s5 + $0xc] sm:$0xf]
  %v326 = vld [vmem:[%s5 + $0x10] sm:$0xf]
  %v327 = vld [vmem:[%s5 + $0x14] sm:$0xf]
  %v328 = vld [vmem:[%s5 + $0x18] sm:$0xf]
  %v329 = vld [vmem:[%s5 + $0x1c] sm:$0xf]
  %v330 = vld [vmem:[%s5 + $0x20] sm:$0xf]
  %v331 = vld [vmem:[%s5 + $0x24] sm:$0xf]
  %v332 = vld [vmem:[%s5 + $0x28] sm:$0xf]
  %v333 = vld [vmem:[%s5 + $0x2c] sm:$0xf]
  %v334 = vld [vmem:[%s5 + $0x30] sm:$0xf]
  %v335 = vld [vmem:[%s5 + $0x34] sm:$0xf]
  %v336 = vld [vmem:[%s5 + $0x38] sm:$0xf]
  %v337 = vld [vmem:[%s5 + $0x3c] sm:$0xf]
  %v338 = vld [vmem:[%s6] sm:$0x1]
  %v340 = vlaneseq
  %v341 = vshrl.u32 %v340, 7
  %v342 = vsub.s32 0, %v341
  %v343 = vrot.slane %v338, %v342
  %v361 = vunpack.c.l.b16 %v322
  %v362 = vunpack.c.l.b16 %v323
  %v363 = vunpack.c.l.b16 %v324
  %v364 = vunpack.c.l.b16 %v325
  %v365 = vunpack.c.l.b16 %v326
  %v366 = vunpack.c.l.b16 %v327
  %v367 = vunpack.c.l.b16 %v328
  %v368 = vunpack.c.l.b16 %v329
  %v369 = vunpack.c.l.b16 %v330
  %v370 = vunpack.c.l.b16 %v331
  %v371 = vunpack.c.l.b16 %v332
  %v372 = vunpack.c.l.b16 %v333
  %v373 = vunpack.c.l.b16 %v334
  %v374 = vunpack.c.l.b16 %v335
  %v375 = vunpack.c.l.b16 %v336
  %v376 = vunpack.c.l.b16 %v337
  %v377 = vpack.c.b16 %v362, %v361
  %v378 = vpack.c.b16 %v364, %v363
  %v379 = vpack.c.b16 %v366, %v365
  %v380 = vpack.c.b16 %v368, %v367
  %v381 = vpack.c.b16 %v370, %v369
  %v382 = vpack.c.b16 %v372, %v371
  %v383 = vpack.c.b16 %v374, %v373
  %v384 = vpack.c.b16 %v376, %v375
  %393 = vmatprep.subr.bf16.mxu0 0
  %394 = vmatpush1.bf16.msra.mxu0 %v377
  %395 = vmatprep.subr.bf16.mxu0 0
  %396 = vmatpush1.bf16.msra.mxu0 %v378
  %397 = vmatprep.subr.bf16.mxu0 0
  %398 = vmatpush1.bf16.msra.mxu0 %v379
  %399 = vmatprep.subr.bf16.mxu0 0
  %400 = vmatpush1.bf16.msra.mxu0 %v380
  %401 = vmatprep.subr.bf16.mxu0 0
  %402 = vmatpush1.bf16.msra.mxu0 %v381
  %403 = vmatprep.subr.bf16.mxu0 0
  %404 = vmatpush1.bf16.msra.mxu0 %v382
  %405 = vmatprep.subr.bf16.mxu0 0
  %406 = vmatpush1.bf16.msra.mxu0 %v383
  %407 = vmatprep.subr.bf16.mxu0 0
  %408 = vmatpush1.bf16.msra.mxu0 %v384
  %409 = vmatprep.subr.bf16.mxu0 0
  %410 = vmatpush1.bf16.msra.mxu0 0
  %411 = vmatprep.subr.bf16.mxu0 0
  %412 = vmatpush1.bf16.msra.mxu0 0
  %413 = vmatprep.subr.bf16.mxu0 0
  %414 = vmatpush1.bf16.msra.mxu0 0
  %415 = vmatprep.subr.bf16.mxu0 0
  %416 = vmatpush1.bf16.msra.mxu0 0
  %417 = vmatprep.subr.bf16.mxu0 0
  %418 = vmatpush1.bf16.msra.mxu0 0
  %419 = vmatprep.subr.bf16.mxu0 0
  %420 = vmatpush1.bf16.msra.mxu0 0
  %421 = vmatprep.subr.bf16.mxu0 0
  %422 = vmatpush1.bf16.msra.mxu0 0
  %423 = vmatprep.subr.bf16.mxu0 0
  %424 = vmatpush1.bf16.msra.mxu0 0
  %425 = vmatprep.mubr.bf16.mxu0 0
  %426 = vmatmul.mubr.bf16.gmra.mrb[0].mxu0 %v320
  %v427 = vpop.f32.mrb[0].mxu0
  %v428 = vadd.f32 %v343, %v427
  %v429 = vpop.f32.mrb[0].mxu0
  %v430 = vpop.f32.mrb[0].mxu0
  %v431 = vadd.f32 %v343, %v430
  %v432 = vpop.f32.mrb[0].mxu0
  %433 = vmatprep.mubr.bf16.mxu0 0
  %434 = vmatmul.mubr.bf16.gmra.mrb[0].mxu0 %v321
  %v435 = vpop.f32.mrb[0].mxu0
  %v436 = vadd.f32 %v343, %v435
  %v437 = vpop.f32.mrb[0].mxu0
  %v438 = vpop.f32.mrb[0].mxu0
  %v439 = vpop.f32.mrb[0].mxu0
  %440 = vdwg.mxu0
  %vm441 = vcmp.gt.f32.partialorder %v428, 0.0
  %vm442 = vcmp.gt.f32.partialorder %v431, 0.0
  %vm443 = vcmp.gt.f32.partialorder %v436, 0.0
  %v444 = vmin.f32 %v428, 0.0
  %v445 = vmin.f32 %v431, 0.0
  %v446 = vmin.f32 %v436, 0.0
  %v447 = vmul.f32 %v444, 1.442695
  %v448 = vpow.pop %v447
  %v449 = vmul.f32 %v445, 1.442695
  %v450 = vpow.pop %v449
  %v451 = vmul.f32 %v446, 1.442695
  %v452 = vpow.pop %v451
  %v453 = vsub.f32 %v448, 1.0
  %v454 = vsub.f32 %v450, 1.0
  %v455 = vsub.f32 %v452, 1.0
  %v456 = vsel %vm441, %v428, %v453
  %v457 = vsel %vm442, %v431, %v454
  %v458 = vsel %vm443, %v436, %v455
  %v459 = vpack.c.bf16 %v457, %v456
  %v460 = vpack.c.bf16 %v458, %v458
  %v461 = vld [vmem:[%s7] sm:$0xf]
  %v462 = vld [vmem:[%s7 + $0x4] sm:$0xf]
  %v463 = vld [vmem:[%s7 + $0x8] sm:$0xf]
  %v464 = vld [vmem:[%s7 + $0xc] sm:$0xf]
  %v465 = vld [vmem:[%s7 + $0x10] sm:$0xf]
  %v466 = vld [vmem:[%s7 + $0x14] sm:$0xf]
  %v467 = vld [vmem:[%s7 + $0x18] sm:$0xf]
  %v468 = vld [vmem:[%s7 + $0x1c] sm:$0xf]
  %v469 = vld [vmem:[%s7 + $0x20] sm:$0xf]
  %v470 = vld [vmem:[%s7 + $0x24] sm:$0xf]
  %v471 = vld [vmem:[%s7 + $0x28] sm:$0xf]
  %v472 = vld [vmem:[%s7 + $0x2c] sm:$0xf]
  %v473 = vld [vmem:[%s7 + $0x30] sm:$0xf]
  %v474 = vld [vmem:[%s7 + $0x34] sm:$0xf]
  %v475 = vld [vmem:[%s7 + $0x38] sm:$0xf]
  %v476 = vld [vmem:[%s7 + $0x3c] sm:$0xf]
  %v477 = vld [vmem:[%s8] sm:$0x1]
  %v479 = vlaneseq
  %v480 = vshrl.u32 %v479, 7
  %v481 = vsub.s32 0, %v480
  %v482 = vrot.slane %v477, %v481
  %v500 = vunpack.c.l.b16 %v461
  %v501 = vunpack.c.l.b16 %v462
  %v502 = vunpack.c.l.b16 %v463
  %v503 = vunpack.c.l.b16 %v464
  %v504 = vunpack.c.l.b16 %v465
  %v505 = vunpack.c.l.b16 %v466
  %v506 = vunpack.c.l.b16 %v467
  %v507 = vunpack.c.l.b16 %v468
  %v508 = vunpack.c.l.b16 %v469
  %v509 = vunpack.c.l.b16 %v470
  %v510 = vunpack.c.l.b16 %v471
  %v511 = vunpack.c.l.b16 %v472
  %v512 = vunpack.c.l.b16 %v473
  %v513 = vunpack.c.l.b16 %v474
  %v514 = vunpack.c.l.b16 %v475
  %v515 = vunpack.c.l.b16 %v476
  %v516 = vpack.c.b16 %v501, %v500
  %v517 = vpack.c.b16 %v503, %v502
  %v518 = vpack.c.b16 %v505, %v504
  %v519 = vpack.c.b16 %v507, %v506
  %v520 = vpack.c.b16 %v509, %v508
  %v521 = vpack.c.b16 %v511, %v510
  %v522 = vpack.c.b16 %v513, %v512
  %v523 = vpack.c.b16 %v515, %v514
  %532 = vmatprep.subr.bf16.mxu0 0
  %533 = vmatpush1.bf16.msra.mxu0 %v516
  %534 = vmatprep.subr.bf16.mxu0 0
  %535 = vmatpush1.bf16.msra.mxu0 %v517
  %536 = vmatprep.subr.bf16.mxu0 0
  %537 = vmatpush1.bf16.msra.mxu0 %v518
  %538 = vmatprep.subr.bf16.mxu0 0
  %539 = vmatpush1.bf16.msra.mxu0 %v519
  %540 = vmatprep.subr.bf16.mxu0 0
  %541 = vmatpush1.bf16.msra.mxu0 %v520
  %542 = vmatprep.subr.bf16.mxu0 0
  %543 = vmatpush1.bf16.msra.mxu0 %v521
  %544 = vmatprep.subr.bf16.mxu0 0
  %545 = vmatpush1.bf16.msra.mxu0 %v522
  %546 = vmatprep.subr.bf16.mxu0 0
  %547 = vmatpush1.bf16.msra.mxu0 %v523
  %548 = vmatprep.subr.bf16.mxu0 0
  %549 = vmatpush1.bf16.msra.mxu0 0
  %550 = vmatprep.subr.bf16.mxu0 0
  %551 = vmatpush1.bf16.msra.mxu0 0
  %552 = vmatprep.subr.bf16.mxu0 0
  %553 = vmatpush1.bf16.msra.mxu0 0
  %554 = vmatprep.subr.bf16.mxu0 0
  %555 = vmatpush1.bf16.msra.mxu0 0
  %556 = vmatprep.subr.bf16.mxu0 0
  %557 = vmatpush1.bf16.msra.mxu0 0
  %558 = vmatprep.subr.bf16.mxu0 0
  %559 = vmatpush1.bf16.msra.mxu0 0
  %560 = vmatprep.subr.bf16.mxu0 0
  %561 = vmatpush1.bf16.msra.mxu0 0
  %562 = vmatprep.subr.bf16.mxu0 0
  %563 = vmatpush1.bf16.msra.mxu0 0
  %564 = vmatprep.mubr.bf16.mxu0 0
  %565 = vmatmul.mubr.bf16.gmra.mrb[0].mxu0 %v459
  %v566 = vpop.f32.mrb[0].mxu0
  %v567 = vadd.f32 %v482, %v566
  %v568 = vpop.f32.mrb[0].mxu0
  %v569 = vpop.f32.mrb[0].mxu0
  %v570 = vadd.f32 %v482, %v569
  %v571 = vpop.f32.mrb[0].mxu0
  %572 = vmatprep.mubr.bf16.mxu0 0
  %573 = vmatmul.mubr.bf16.gmra.mrb[0].mxu0 %v460
  %v574 = vpop.f32.mrb[0].mxu0
  %v575 = vadd.f32 %v482, %v574
  %v576 = vpop.f32.mrb[0].mxu0
  %v577 = vpop.f32.mrb[0].mxu0
  %v578 = vpop.f32.mrb[0].mxu0
  %579 = vdwg.mxu0
  %vm580 = vcmp.gt.f32.partialorder %v567, 0.0
  %vm581 = vcmp.gt.f32.partialorder %v570, 0.0
  %vm582 = vcmp.gt.f32.partialorder %v575, 0.0
  %v583 = vmin.f32 %v567, 0.0
  %v584 = vmin.f32 %v570, 0.0
  %v585 = vmin.f32 %v575, 0.0
  %v586 = vmul.f32 %v583, 1.442695
  %v587 = vpow.pop %v586
  %v588 = vmul.f32 %v584, 1.442695
  %v589 = vpow.pop %v588
  %v590 = vmul.f32 %v585, 1.442695
  %v591 = vpow.pop %v590
  %v592 = vsub.f32 %v587, 1.0
  %v593 = vsub.f32 %v589, 1.0
  %v594 = vsub.f32 %v591, 1.0
  %v595 = vsel %vm580, %v567, %v592
  %v596 = vsel %vm581, %v570, %v593
  %v597 = vsel %vm582, %v575, %v594
  %v598 = vpack.c.bf16 %v596, %v595
  %v599 = vpack.c.bf16 %v597, %v597
  %v600 = vld [vmem:[%s9] sm:$0xf]
  %v601 = vld [vmem:[%s9 + $0x4] sm:$0xf]
  %v602 = vld [vmem:[%s9 + $0x8] sm:$0xf]
  %v603 = vld [vmem:[%s9 + $0xc] sm:$0xf]
  %v604 = vld [vmem:[%s9 + $0x10] sm:$0xf]
  %v605 = vld [vmem:[%s9 + $0x14] sm:$0xf]
  %v606 = vld [vmem:[%s9 + $0x18] sm:$0xf]
  %v607 = vld [vmem:[%s9 + $0x1c] sm:$0xf]
  %v608 = vld [vmem:[%s9 + $0x20] sm:$0xf]
  %v609 = vld [vmem:[%s9 + $0x24] sm:$0xf]
  %v610 = vld [vmem:[%s9 + $0x28] sm:$0xf]
  %v611 = vld [vmem:[%s9 + $0x2c] sm:$0xf]
  %v612 = vld [vmem:[%s9 + $0x30] sm:$0xf]
  %v613 = vld [vmem:[%s9 + $0x34] sm:$0xf]
  %v614 = vld [vmem:[%s9 + $0x38] sm:$0xf]
  %v615 = vld [vmem:[%s9 + $0x3c] sm:$0xf]
  %v616 = vld [vmem:[%s10] sm:$0x1]
  %v618 = vlaneseq
  %v619 = vshrl.u32 %v618, 7
  %v620 = vsub.s32 0, %v619
  %v621 = vrot.slane %v616, %v620
  %v639 = vunpack.c.l.b16 %v600
  %v640 = vunpack.c.l.b16 %v601
  %v641 = vunpack.c.l.b16 %v602
  %v642 = vunpack.c.l.b16 %v603
  %v643 = vunpack.c.l.b16 %v604
  %v644 = vunpack.c.l.b16 %v605
  %v645 = vunpack.c.l.b16 %v606
  %v646 = vunpack.c.l.b16 %v607
  %v647 = vunpack.c.l.b16 %v608
  %v648 = vunpack.c.l.b16 %v609
  %v649 = vunpack.c.l.b16 %v610
  %v650 = vunpack.c.l.b16 %v611
  %v651 = vunpack.c.l.b16 %v612
  %v652 = vunpack.c.l.b16 %v613
  %v653 = vunpack.c.l.b16 %v614
  %v654 = vunpack.c.l.b16 %v615
  %v655 = vpack.c.b16 %v640, %v639
  %v656 = vpack.c.b16 %v642, %v641
  %v657 = vpack.c.b16 %v644, %v643
  %v658 = vpack.c.b16 %v646, %v645
  %v659 = vpack.c.b16 %v648, %v647
  %v660 = vpack.c.b16 %v650, %v649
  %v661 = vpack.c.b16 %v652, %v651
  %v662 = vpack.c.b16 %v654, %v653
  %671 = vmatprep.subr.bf16.mxu0 0
  %672 = vmatpush1.bf16.msra.mxu0 %v655
  %673 = vmatprep.subr.bf16.mxu0 0
  %674 = vmatpush1.bf16.msra.mxu0 %v656
  %675 = vmatprep.subr.bf16.mxu0 0
  %676 = vmatpush1.bf16.msra.mxu0 %v657
  %677 = vmatprep.subr.bf16.mxu0 0
  %678 = vmatpush1.bf16.msra.mxu0 %v658
  %679 = vmatprep.subr.bf16.mxu0 0
  %680 = vmatpush1.bf16.msra.mxu0 %v659
  %681 = vmatprep.subr.bf16.mxu0 0
  %682 = vmatpush1.bf16.msra.mxu0 %v660
  %683 = vmatprep.subr.bf16.mxu0 0
  %684 = vmatpush1.bf16.msra.mxu0 %v661
  %685 = vmatprep.subr.bf16.mxu0 0
  %686 = vmatpush1.bf16.msra.mxu0 %v662
  %687 = vmatprep.subr.bf16.mxu0 0
  %688 = vmatpush1.bf16.msra.mxu0 0
  %689 = vmatprep.subr.bf16.mxu0 0
  %690 = vmatpush1.bf16.msra.mxu0 0
  %691 = vmatprep.subr.bf16.mxu0 0
  %692 = vmatpush1.bf16.msra.mxu0 0
  %693 = vmatprep.subr.bf16.mxu0 0
  %694 = vmatpush1.bf16.msra.mxu0 0
  %695 = vmatprep.subr.bf16.mxu0 0
  %696 = vmatpush1.bf16.msra.mxu0 0
  %697 = vmatprep.subr.bf16.mxu0 0
  %698 = vmatpush1.bf16.msra.mxu0 0
  %699 = vmatprep.subr.bf16.mxu0 0
  %700 = vmatpush1.bf16.msra.mxu0 0
  %701 = vmatprep.subr.bf16.mxu0 0
  %702 = vmatpush1.bf16.msra.mxu0 0
  %703 = vmatprep.mubr.bf16.mxu0 0
  %704 = vmatmul.mubr.bf16.gmra.mrb[0].mxu0 %v598
  %v705 = vpop.f32.mrb[0].mxu0
  %v706 = vadd.f32 %v621, %v705
  %v707 = vpop.f32.mrb[0].mxu0
  %v708 = vpop.f32.mrb[0].mxu0
  %v709 = vadd.f32 %v621, %v708
  %v710 = vpop.f32.mrb[0].mxu0
  %711 = vmatprep.mubr.bf16.mxu0 0
  %712 = vmatmul.mubr.bf16.gmra.mrb[0].mxu0 %v599
  %v713 = vpop.f32.mrb[0].mxu0
  %v714 = vadd.f32 %v621, %v713
  %v715 = vpop.f32.mrb[0].mxu0
  %v716 = vpop.f32.mrb[0].mxu0
  %v717 = vpop.f32.mrb[0].mxu0
  %718 = vdwg.mxu0
  %vm719 = vcmp.gt.f32.partialorder %v706, 0.0
  %vm720 = vcmp.gt.f32.partialorder %v709, 0.0
  %vm721 = vcmp.gt.f32.partialorder %v714, 0.0
  %v722 = vmin.f32 %v706, 0.0
  %v723 = vmin.f32 %v709, 0.0
  %v724 = vmin.f32 %v714, 0.0
  %v725 = vmul.f32 %v722, 1.442695
  %v726 = vpow.pop %v725
  %v727 = vmul.f32 %v723, 1.442695
  %v728 = vpow.pop %v727
  %v729 = vmul.f32 %v724, 1.442695
  %v730 = vpow.pop %v729
  %v731 = vsub.f32 %v726, 1.0
  %v732 = vsub.f32 %v728, 1.0
  %v733 = vsub.f32 %v730, 1.0
  %v734 = vsel %vm719, %v706, %v731
  %v735 = vsel %vm720, %v709, %v732
  %v736 = vsel %vm721, %v714, %v733
  %737 = vst [vmem:[%s11] sm:$0xff] %v734
  %738 = vst [vmem:[%s11 + $0x8] sm:$0xff] %v735
  %739 = vst [vmem:[%s11 + $0x10] sm:$0xff] %v736
  // Predicated region
  $region46: #{model_forward.3} parent=0 // pred_check
    _
  $region47: #{model_forward.3} parent=0 // pred_check_branch
    %741 = sbr.rel (0) target = $region49
  $region48: #{model_forward.3} parent=0 // pred_region
    _
  $region49: #{model_forward.3} parent=0 // pred_fallthru
    _
  // Predicated region
  $region50: #{model_forward.3} parent=0 // pred_check
    _
  $region51: #{model_forward.3} parent=0 // pred_check_branch
    %743 = sbr.rel (0) target = $region53
  $region52: #{model_forward.3} parent=0 // pred_region
    _
  $region53: #{model_forward.3} parent=0 // pred_fallthru
    _

</llo_original>
